<compile_context>
chip_gen: v5e
topology: v5e:2x2
jax: 0.10.0
libtpu: 0.0.40
codegen_flags: <defaults>
</compile_context>

<pallas_src>
import functools

import jax
import jax.numpy as jnp
from jax.experimental import pallas as pl
from jax.experimental.pallas import tpu as pltpu


def _softplus(x):
    # stable softplus using only exp/log/abs/max (VPU/EUP friendly)
    return jnp.maximum(x, 0.0) + jnp.log(1.0 + jnp.exp(-jnp.abs(x)))


def _sigmoid(x):
    return 1.0 / (1.0 + jnp.exp(-x))


# ----------------------------------------------------------------------------
# Kernel: one grid step = one time step for one batch group (Bg elements).
# ----------------------------------------------------------------------------
def ntm_write_head_seq_kernel(hid_ref, w0_ref, mem_in_ref, wks_ref, bks_ref,
                              weat_ref, bea_ref, w_out_ref, mem_out_ref,
                              wstate_ref):
    t = pl.program_id(1)

    # t == 0: pull this batch group's initial state into the VMEM-resident
    # memory output block and the carried-weighting scratch.
    @pl.when(t == 0)
    def _():
        mem_out_ref[...] = mem_in_ref[...]      # (Bg, M, N)
        wstate_ref[...] = w0_ref[...]           # (Bg, N)

    hid = hid_ref[...]                          # (Bg, C)
    Bg = hid.shape[0]
    M = weat_ref.shape[0] // 2
    N = wstate_ref.shape[1]

    # ---- fc_write -----------------------------------------------------------
    # k + scalar params in lane layout: (Bg, C) @ (C, M+6)          [MXU, nn]
    o_ks = (jnp.dot(hid, wks_ref[...], preferred_element_type=jnp.float32)
            + bks_ref[...])                     # (Bg, M+6)
    k = o_ks[:, :M]                             # (Bg, M)
    scal = o_ks[:, M:M + 6]                     # (Bg, 6) = [beta,g,s0,s1,s2,gamma]

    # e / a directly in column (sublane) layout: contract C of W_ea^T (2M, C)
    # with C of hid (Bg, C) -> (2M, Bg)                             [MXU, nt]
    ea_cols = jax.lax.dot_general(
        weat_ref[...], hid, (((1,), (1,)), ((), ())),
        preferred_element_type=jnp.float32) + bea_ref[...]          # (2M, Bg)
    # activate BEFORE any lane broadcast: EUP work is M*Bg, not M*N.
    e_cols = _sigmoid(ea_cols[:M, :])           # (M, Bg)
    a_cols = ea_cols[M:, :]                     # (M, Bg)

    # ---- scalar head activations on the packed (Bg, 6) tile ------------------
    sp = _softplus(scal)
    sg = _sigmoid(scal)
    s_raw = scal[:, 2:5]
    s_exp = jnp.exp(s_raw - jnp.max(s_raw, axis=1, keepdims=True))
    s = s_exp / jnp.sum(s_exp, axis=1, keepdims=True)               # (Bg, 3)
    k_sq = jnp.sum(k * k, axis=1, keepdims=True)                    # (Bg, 1)

    # ---- per batch element (Bg is tiny and static: unrolled) -----------------
    for b in range(Bg):
        beta = sp[b:b + 1, 0:1]                 # (1, 1)
        g = sg[b:b + 1, 1:2]                    # (1, 1)
        gamma = 1.0 + sp[b:b + 1, 5:6]          # (1, 1)

        mem_b = mem_out_ref[b]                  # (M, N) VMEM-resident state
        k_b = k[b:b + 1, :]                     # (1, M)
        w_prev = wstate_ref[b:b + 1, :]         # (1, N)

        # content addressing: cosine similarity along M, softmax over N
        dots = jnp.dot(k_b, mem_b, preferred_element_type=jnp.float32)  # (1,N) MXU
        mem_sq = jnp.sum(mem_b * mem_b, axis=0, keepdims=True)          # (1,N)
        cos = dots * jax.lax.rsqrt(
            jnp.maximum(mem_sq * k_sq[b:b + 1, :], 1e-16))
        logits = beta * cos
        l_exp = jnp.exp(logits - jnp.max(logits, axis=1, keepdims=True))
        wc = l_exp / jnp.sum(l_exp, axis=1, keepdims=True)               # (1,N)

        # interpolate with previous weighting
        wg = g * wc + (1.0 - g) * w_prev

        # 3-tap circular convolution shift
        w_hat = (s[b:b + 1, 0:1] * pltpu.roll(wg, 1, axis=1)
                 + s[b:b + 1, 1:2] * wg
                 + s[b:b + 1, 2:3] * pltpu.roll(wg, N - 1, axis=1))

        # sharpen (exact divide so sum(w) == 1 to f32 precision)
        w_pow = jnp.where(w_hat > 0.0,
                          jnp.exp(gamma * jnp.log(jnp.maximum(w_hat, 1e-38))),
                          0.0)
        w_b = w_pow / (jnp.sum(w_pow, axis=1, keepdims=True) + 1e-16)    # (1,N)

        w_out_ref[b:b + 1, :] = w_b
        wstate_ref[b:b + 1, :] = w_b

        # memory write: M' = M * (1 - e w^T) + a w^T, lane-dense (M, N)
        e_b = e_cols[:, b:b + 1]                # (M, 1)
        a_b = a_cols[:, b:b + 1]                # (M, 1)
        mem_out_ref[b] = mem_b * (1.0 - e_b * w_b) + a_b * w_b


# ----------------------------------------------------------------------------
# Wrappers
# ----------------------------------------------------------------------------
def prepare_ntm_write_params(w_fc, b_fc, M):
    """Static fc_write parameter prep -- call ONCE at parameter init."""
    b_fc = b_fc.reshape(1, -1)
    w_ks = w_fc[:, :M + 6]                      # (C, M+6): k + scalars
    b_ks = b_fc[:, :M + 6]                      # (1, M+6)
    w_eaT = jnp.transpose(w_fc[:, M + 6:])      # (2M, C): rows = [e; a]
    b_ea = jnp.transpose(b_fc[:, M + 6:])       # (2M, 1)
    return w_ks, b_ks, w_eaT, b_ea


@functools.partial(jax.jit, static_argnames=("batch_groups",))
def ntm_write_head_seq(hids, w0, memory, params, *, batch_groups=1):
    """Run T NTMWriteHead forward steps in one fused pallas_call.

    hids:   (T, B, C) controller features per step
    w0:     (B, N)    initial weighting
    memory: (B, M, N) memory state, N slots on the lane axis (consumed)
    Returns (w_seq (T, B, N), new_memory (B, M, N)).

    batch_groups=1 -> one grid step per time step (best on 1-TC v5e/v6e);
    batch_groups=2 -> one parallel batch group per core on megacore (v7x).
    """
    w_ks, b_ks, w_eaT, b_ea = params
    T, B, C = hids.shape
    _, M, N = memory.shape
    BG = batch_groups
    if B % BG != 0:
        raise ValueError("batch_groups must divide the batch size")
    Bg = B // BG

    # 4-D / 3-D views so every BlockSpec's trailing dims equal full array dims.
    hids4 = hids.reshape(T, BG, Bg, C)
    w0_3 = w0.reshape(BG, Bg, N)
    mem4 = memory.reshape(BG, Bg, M, N)

    w4, mem4_new = pl.pallas_call(
        ntm_write_head_seq_kernel,
        grid=(BG, T),
        in_specs=[
            pl.BlockSpec((None, None, Bg, C), lambda bg, t: (t, bg, 0, 0)),   # hid_t
            pl.BlockSpec((None, Bg, N), lambda bg, t: (bg, 0, 0)),            # w0
            pl.BlockSpec((None, Bg, M, N), lambda bg, t: (bg, 0, 0, 0)),      # memory
            pl.BlockSpec((C, M + 6), lambda bg, t: (0, 0)),                   # W_ks
            pl.BlockSpec((1, M + 6), lambda bg, t: (0, 0)),                   # b_ks
            pl.BlockSpec((2 * M, C), lambda bg, t: (0, 0)),                   # W_ea^T
            pl.BlockSpec((2 * M, 1), lambda bg, t: (0, 0)),                   # b_ea
        ],
        out_specs=(
            pl.BlockSpec((None, None, Bg, N), lambda bg, t: (t, bg, 0, 0)),   # w per step
            pl.BlockSpec((None, Bg, M, N), lambda bg, t: (bg, 0, 0, 0)),      # memory (resident over T)
        ),
        out_shape=(
            jax.ShapeDtypeStruct((T, BG, Bg, N), jnp.float32),
            jax.ShapeDtypeStruct((BG, Bg, M, N), jnp.float32),
        ),
        scratch_shapes=[pltpu.VMEM((Bg, N), jnp.float32)],   # carried weighting
        input_output_aliases={2: 1},                         # in-place memory update
        compiler_params=pltpu.CompilerParams(
            dimension_semantics=("parallel", "arbitrary")),
    )(hids4, w0_3, mem4, w_ks, b_ks, w_eaT, b_ea)

    return w4.reshape(T, B, N), mem4_new.reshape(B, M, N)


def ntm_write_head(hid, w_prev, memory, params, *, batch_groups=1):
    """Single NTMWriteHead.forward(hid, w_prev): returns (w, new_memory)."""
    w_seq, mem_new = ntm_write_head_seq(hid[None, :, :], w_prev, memory, params,
                                        batch_groups=batch_groups)
    return w_seq[0], mem_new


# ----------------------------------------------------------------------------
# Pure-JAX reference
# ----------------------------------------------------------------------------
def ntm_write_head_step_ref(hid, w_prev, memory, w_fc, b_fc):
    _, M, N = memory.shape
    o = hid @ w_fc + b_fc
    k = o[:, :M]
    beta = _softplus(o[:, M:M + 1])
    g = _sigmoid(o[:, M + 1:M + 2])
    s = jax.nn.softmax(o[:, M + 2:M + 5], axis=1)
    gamma = 1.0 + _softplus(o[:, M + 5:M + 6])
    e = _sigmoid(o[:, M + 6:2 * M + 6])
    a = o[:, 2 * M + 6:]
    dots = jnp.einsum('bm,bmn->bn', k, memory)
    mem_norm = jnp.sqrt(jnp.sum(memory * memory, axis=1))          # (B, N)
    k_norm = jnp.sqrt(jnp.sum(k * k, axis=1, keepdims=True))       # (B, 1)
    cos = dots / jnp.maximum(mem_norm * k_norm, 1e-8)
    wc = jax.nn.softmax(beta * cos, axis=1)
    wg = g * wc + (1.0 - g) * w_prev
    w_hat = (s[:, 0:1] * jnp.roll(wg, 1, axis=1) + s[:, 1:2] * wg
             + s[:, 2:3] * jnp.roll(wg, -1, axis=1))
    w_pow = jnp.where(w_hat > 0.0,
                      jnp.exp(gamma * jnp.log(jnp.maximum(w_hat, 1e-38))), 0.0)
    w = w_pow / (jnp.sum(w_pow, axis=1, keepdims=True) + 1e-16)
    mem_new = (memory * (1.0 - e[:, :, None] * w[:, None, :])
               + a[:, :, None] * w[:, None, :])
    return w, mem_new


def ntm_write_head_seq_ref(hids, w0, memory, w_fc, b_fc):
    ws = []
    w, mem = w0, memory
    for t in range(hids.shape[0]):
        w, mem = ntm_write_head_step_ref(hids[t], w, mem, w_fc, b_fc)
        ws.append(w)
    return jnp.stack(ws, axis=0), mem


if __name__ == "__main__":
    B, cdim, N, M, T = 2, 32, 128, 32, 8     # batch, controller dim, slots, word, steps
    L = 3 * M + 6                            # sum(write_lens) = M+1+1+3+1+M+M

    key = jax.random.PRNGKey(0)
    k1, k2, k3, k4, k5 = jax.random.split(key, 5)

    # nn.Linear-style parameters, stored transposed as (C, L)
    bound = 1.0 / jnp.sqrt(jnp.float32(cdim))
    w_fc = jax.random.uniform(k1, (cdim, L), jnp.float32, -bound, bound)
    b_fc = jax.random.uniform(k2, (1, L), jnp.float32, -bound, bound)

    # inputs / state (memory kept in the lane-dense (B, M, N) layout)
    hids = jax.random.normal(k3, (T, B, cdim), jnp.float32)
    memory = 0.1 * jax.random.normal(k4, (B, M, N), jnp.float32)
    w0 = jax.nn.softmax(jax.random.normal(k5, (B, N), jnp.float32), axis=1)

    params = prepare_ntm_write_params(w_fc, b_fc, M)   # hoisted: done once

    # references first (the kernel logically consumes the memory state)
    w_seq_r, mem_r = jax.block_until_ready(
        ntm_write_head_seq_ref(hids, w0, memory, w_fc, b_fc))
    w1_r, mem1_r = jax.block_until_ready(
        ntm_write_head_step_ref(hids[0], w0, memory, w_fc, b_fc))

    # fused T-step kernel (batch_groups=2 would put one group per core on v7x)
    w_seq, mem_new = jax.block_until_ready(
        ntm_write_head_seq(hids, w0, memory, params, batch_groups=1))

    assert jnp.allclose(w_seq, w_seq_r, atol=1e-4, rtol=1e-3), "weighting mismatch"
    assert jnp.allclose(mem_new, mem_r, atol=1e-4, rtol=1e-3), "memory mismatch"
    assert jnp.allclose(jnp.sum(w_seq, axis=-1), 1.0, atol=1e-4), "w not normalized"

    # single forward() step (module semantics) sanity check
    w1, mem1 = jax.block_until_ready(ntm_write_head(hids[0], w0, memory, params))
    assert jnp.allclose(w1, w1_r, atol=1e-4, rtol=1e-3), "single-step w mismatch"
    assert jnp.allclose(mem1, mem1_r, atol=1e-4, rtol=1e-3), "single-step mem mismatch"

    print("KERNEL_OK")
</pallas_src>

<mosaic_0001>
module attributes {stable_mosaic.version = 11 : i64} {
  func.func @ntm_write_head_seq_kernel(%arg0: i32, %arg1: i32, %arg2: memref<1x1x2x32xf32, #tpu.memory_space<vmem>>, %arg3: memref<1x2x128xf32, #tpu.memory_space<vmem>>, %arg4: memref<1x2x32x128xf32, #tpu.memory_space<vmem>>, %arg5: memref<32x38xf32, #tpu.memory_space<vmem>>, %arg6: memref<1x38xf32, #tpu.memory_space<vmem>>, %arg7: memref<64x32xf32, #tpu.memory_space<vmem>>, %arg8: memref<64x1xf32, #tpu.memory_space<vmem>>, %arg9: memref<1x1x2x128xf32, #tpu.memory_space<vmem>>, %arg10: memref<1x2x32x128xf32, #tpu.memory_space<vmem>>, %arg11: memref<2x128xf32, #tpu.memory_space<vmem>>) attributes {dimension_semantics = [#tpu.dimension_semantics<parallel>, #tpu.dimension_semantics<arbitrary>], iteration_bounds = array<i64: 1, 8>, scalar_prefetch = 0 : i64, scratch_operands = 1 : i64, tpu.core_type = #tpu.core_type<tc>, window_params = [{transform_indices = @transform_0, window_bounds = array<i64: 1, 1, 2, 32>}, {transform_indices = @transform_1, window_bounds = array<i64: 1, 2, 128>}, {transform_indices = @transform_2, window_bounds = array<i64: 1, 2, 32, 128>}, {pipeline_mode = #tpu.pipeline_mode<synchronous>, transform_indices = @transform_3, window_bounds = array<i64: 32, 38>}, {pipeline_mode = #tpu.pipeline_mode<synchronous>, transform_indices = @transform_4, window_bounds = array<i64: 1, 38>}, {pipeline_mode = #tpu.pipeline_mode<synchronous>, transform_indices = @transform_5, window_bounds = array<i64: 64, 32>}, {pipeline_mode = #tpu.pipeline_mode<synchronous>, transform_indices = @transform_6, window_bounds = array<i64: 64, 1>}, {transform_indices = @transform_7, window_bounds = array<i64: 1, 1, 2, 128>}, {transform_indices = @transform_8, window_bounds = array<i64: 1, 2, 32, 128>}]} {
    %c0_i32 = arith.constant 0 : i32
    %0 = arith.cmpi eq, %arg1, %c0_i32 : i32
    %1 = arith.extui %0 : i1 to i32
    %c0_i32_0 = arith.constant 0 : i32
    %2 = arith.cmpi ne, %1, %c0_i32_0 : i32
    scf.if %2 {
      %c0_84 = arith.constant 0 : index
      %c0_85 = arith.constant 0 : index
      %c0_86 = arith.constant 0 : index
      %c0_87 = arith.constant 0 : index
      %228 = vector.load %arg4[%c0_84, %c0_85, %c0_86, %c0_87] : memref<1x2x32x128xf32, #tpu.memory_space<vmem>>, vector<1x2x32x128xf32>
      %229 = vector.shape_cast %228 : vector<1x2x32x128xf32> to vector<2x32x128xf32>
      %c0_88 = arith.constant 0 : index
      %c0_89 = arith.constant 0 : index
      %c0_90 = arith.constant 0 : index
      %c0_91 = arith.constant 0 : index
      %230 = vector.load %arg10[%c0_88, %c0_89, %c0_90, %c0_91] : memref<1x2x32x128xf32, #tpu.memory_space<vmem>>, vector<1x2x32x128xf32>
      %231 = vector.shape_cast %230 : vector<1x2x32x128xf32> to vector<2x32x128xf32>
      %232 = vector.shape_cast %229 : vector<2x32x128xf32> to vector<1x2x32x128xf32>
      tpu.vector_store %arg10[%c0_88, %c0_89, %c0_90, %c0_91], %232 {strides = array<i32>} : memref<1x2x32x128xf32, #tpu.memory_space<vmem>>, vector<1x2x32x128xf32>,
      %c0_92 = arith.constant 0 : index
      %c0_93 = arith.constant 0 : index
      %c0_94 = arith.constant 0 : index
      %233 = vector.load %arg3[%c0_92, %c0_93, %c0_94] : memref<1x2x128xf32, #tpu.memory_space<vmem>>, vector<1x2x128xf32>
      %234 = vector.shape_cast %233 : vector<1x2x128xf32> to vector<2x128xf32>
      %c0_95 = arith.constant 0 : index
      %c0_96 = arith.constant 0 : index
      %235 = vector.load %arg11[%c0_95, %c0_96] : memref<2x128xf32, #tpu.memory_space<vmem>>, vector<2x128xf32>
      tpu.vector_store %arg11[%c0_95, %c0_96], %234 {strides = array<i32>} : memref<2x128xf32, #tpu.memory_space<vmem>>, vector<2x128xf32>,
    } else {
    }
    %c0 = arith.constant 0 : index
    %c0_1 = arith.constant 0 : index
    %c0_2 = arith.constant 0 : index
    %c0_3 = arith.constant 0 : index
    %3 = vector.load %arg2[%c0, %c0_1, %c0_2, %c0_3] : memref<1x1x2x32xf32, #tpu.memory_space<vmem>>, vector<1x1x2x32xf32>
    %4 = vector.shape_cast %3 : vector<1x1x2x32xf32> to vector<2x32xf32>
    %c0_4 = arith.constant 0 : index
    %c0_5 = arith.constant 0 : index
    %5 = vector.load %arg5[%c0_4, %c0_5] : memref<32x38xf32, #tpu.memory_space<vmem>>, vector<32x38xf32>
    %cst = arith.constant dense<0.000000e+00> : vector<2x38xf32>
    %6 = tpu.matmul %4, %5, %cst {dimension_numbers = #tpu.dot_dimension_numbers<[1], [0], [0], [1], [0, 0, 1, 1], [], []>} : vector<2x32xf32>, vector<32x38xf32>, vector<2x38xf32> -> vector<2x38xf32>
    %c0_6 = arith.constant 0 : index
    %c0_7 = arith.constant 0 : index
    %7 = vector.load %arg6[%c0_6, %c0_7] : memref<1x38xf32, #tpu.memory_space<vmem>>, vector<1x38xf32>
    %8 = vector.broadcast %7 : vector<1x38xf32> to vector<2x38xf32>
    %9 = arith.addf %6, %8 : vector<2x38xf32>
    %10 = vector.extract_strided_slice %9 {offsets = [0, 0], sizes = [2, 32], strides = [1, 1]} : vector<2x38xf32> to vector<2x32xf32>
    %11 = vector.extract_strided_slice %9 {offsets = [0, 32], sizes = [2, 6], strides = [1, 1]} : vector<2x38xf32> to vector<2x6xf32>
    %c0_8 = arith.constant 0 : index
    %c0_9 = arith.constant 0 : index
    %12 = vector.load %arg7[%c0_8, %c0_9] : memref<64x32xf32, #tpu.memory_space<vmem>>, vector<64x32xf32>
    %cst_10 = arith.constant dense<0.000000e+00> : vector<64x2xf32>
    %13 = tpu.matmul %12, %4, %cst_10 {dimension_numbers = #tpu.dot_dimension_numbers<[1], [1], [0], [0], [0, 0, 1, 0], [], []>} : vector<64x32xf32>, vector<2x32xf32>, vector<64x2xf32> -> vector<64x2xf32>
    %c0_11 = arith.constant 0 : index
    %c0_12 = arith.constant 0 : index
    %14 = vector.load %arg8[%c0_11, %c0_12] : memref<64x1xf32, #tpu.memory_space<vmem>>, vector<64x1xf32>
    %15 = vector.broadcast %14 : vector<64x1xf32> to vector<64x2xf32>
    %16 = arith.addf %13, %15 : vector<64x2xf32>
    %17 = vector.extract_strided_slice %16 {offsets = [0, 0], sizes = [32, 2], strides = [1, 1]} : vector<64x2xf32> to vector<32x2xf32>
    %cst_13 = arith.constant 0.000000e+00 : f32
    %18 = vector.broadcast %cst_13 : f32 to vector<32x2xf32>
    %19 = arith.subf %18, %17 : vector<32x2xf32>
    %20 = math.exp %19 : vector<32x2xf32>
    %cst_14 = arith.constant 1.000000e+00 : f32
    %21 = vector.broadcast %cst_14 : f32 to vector<32x2xf32>
    %22 = arith.addf %21, %20 : vector<32x2xf32>
    %cst_15 = arith.constant 1.000000e+00 : f32
    %23 = vector.broadcast %cst_15 : f32 to vector<32x2xf32>
    %24 = arith.divf %23, %22 : vector<32x2xf32>
    %25 = vector.extract_strided_slice %16 {offsets = [32, 0], sizes = [32, 2], strides = [1, 1]} : vector<64x2xf32> to vector<32x2xf32>
    %cst_16 = arith.constant 0.000000e+00 : f32
    %26 = vector.broadcast %cst_16 : f32 to vector<2x6xf32>
    %27 = arith.maximumf %11, %26 : vector<2x6xf32>
    %28 = math.absf %11 : vector<2x6xf32>
    %cst_17 = arith.constant 0.000000e+00 : f32
    %29 = vector.broadcast %cst_17 : f32 to vector<2x6xf32>
    %30 = arith.subf %29, %28 : vector<2x6xf32>
    %31 = math.exp %30 : vector<2x6xf32>
    %cst_18 = arith.constant 1.000000e+00 : f32
    %32 = vector.broadcast %cst_18 : f32 to vector<2x6xf32>
    %33 = arith.addf %32, %31 : vector<2x6xf32>
    %34 = math.log %33 : vector<2x6xf32>
    %35 = arith.addf %27, %34 : vector<2x6xf32>
    %cst_19 = arith.constant 0.000000e+00 : f32
    %36 = vector.broadcast %cst_19 : f32 to vector<2x6xf32>
    %37 = arith.subf %36, %11 : vector<2x6xf32>
    %38 = math.exp %37 : vector<2x6xf32>
    %cst_20 = arith.constant 1.000000e+00 : f32
    %39 = vector.broadcast %cst_20 : f32 to vector<2x6xf32>
    %40 = arith.addf %39, %38 : vector<2x6xf32>
    %cst_21 = arith.constant 1.000000e+00 : f32
    %41 = vector.broadcast %cst_21 : f32 to vector<2x6xf32>
    %42 = arith.divf %41, %40 : vector<2x6xf32>
    %43 = vector.extract_strided_slice %11 {offsets = [0, 2], sizes = [2, 3], strides = [1, 1]} : vector<2x6xf32> to vector<2x3xf32>
    %cst_22 = arith.constant dense<0xFF800000> : vector<2xf32>
    %44 = vector.multi_reduction <maximumf>, %43, %cst_22 [1] : vector<2x3xf32> to vector<2xf32>
    %45 = vector.shape_cast %44 : vector<2xf32> to vector<2x1xf32>
    %46 = vector.broadcast %45 : vector<2x1xf32> to vector<2x3xf32>
    %47 = arith.subf %43, %46 : vector<2x3xf32>
    %48 = math.exp %47 : vector<2x3xf32>
    %cst_23 = arith.constant dense<0.000000e+00> : vector<2xf32>
    %49 = vector.multi_reduction <add>, %48, %cst_23 [1] : vector<2x3xf32> to vector<2xf32>
    %50 = vector.shape_cast %49 : vector<2xf32> to vector<2x1xf32>
    %51 = vector.broadcast %50 : vector<2x1xf32> to vector<2x3xf32>
    %52 = arith.divf %48, %51 : vector<2x3xf32>
    %53 = arith.mulf %10, %10 : vector<2x32xf32>
    %cst_24 = arith.constant dense<0.000000e+00> : vector<2xf32>
    %54 = vector.multi_reduction <add>, %53, %cst_24 [1] : vector<2x32xf32> to vector<2xf32>
    %55 = vector.shape_cast %54 : vector<2xf32> to vector<2x1xf32>
    %56 = vector.extract_strided_slice %35 {offsets = [0, 0], sizes = [1, 1], strides = [1, 1]} : vector<2x6xf32> to vector<1x1xf32>
    %57 = vector.extract_strided_slice %42 {offsets = [0, 1], sizes = [1, 1], strides = [1, 1]} : vector<2x6xf32> to vector<1x1xf32>
    %58 = vector.extract_strided_slice %35 {offsets = [0, 5], sizes = [1, 1], strides = [1, 1]} : vector<2x6xf32> to vector<1x1xf32>
    %cst_25 = arith.constant 1.000000e+00 : f32
    %59 = vector.broadcast %cst_25 : f32 to vector<1x1xf32>
    %60 = arith.addf %59, %58 : vector<1x1xf32>
    %c0_26 = arith.constant 0 : index
    %c0_27 = arith.constant 0 : index
    %c0_28 = arith.constant 0 : index
    %c0_29 = arith.constant 0 : index
    %61 = vector.load %arg10[%c0_26, %c0_27, %c0_28, %c0_29] : memref<1x2x32x128xf32, #tpu.memory_space<vmem>>, vector<1x1x32x128xf32>
    %62 = vector.shape_cast %61 : vector<1x1x32x128xf32> to vector<32x128xf32>
    %63 = vector.extract_strided_slice %10 {offsets = [0, 0], sizes = [1, 32], strides = [1, 1]} : vector<2x32xf32> to vector<1x32xf32>
    %c0_30 = arith.constant 0 : index
    %c0_31 = arith.constant 0 : index
    %64 = vector.load %arg11[%c0_30, %c0_31] : memref<2x128xf32, #tpu.memory_space<vmem>>, vector<1x128xf32>
    %cst_32 = arith.constant dense<0.000000e+00> : vector<1x128xf32>
    %65 = tpu.matmul %63, %62, %cst_32 {dimension_numbers = #tpu.dot_dimension_numbers<[1], [0], [0], [1], [0, 0, 1, 1], [], []>} : vector<1x32xf32>, vector<32x128xf32>, vector<1x128xf32> -> vector<1x128xf32>
    %66 = arith.mulf %62, %62 : vector<32x128xf32>
    %cst_33 = arith.constant dense<0.000000e+00> : vector<128xf32>
    %67 = vector.multi_reduction <add>, %66, %cst_33 [0] : vector<32x128xf32> to vector<128xf32>
    %68 = vector.shape_cast %67 : vector<128xf32> to vector<1x128xf32>
    %69 = vector.extract_strided_slice %55 {offsets = [0, 0], sizes = [1, 1], strides = [1, 1]} : vector<2x1xf32> to vector<1x1xf32>
    %70 = vector.broadcast %69 : vector<1x1xf32> to vector<1x128xf32>
    %71 = arith.mulf %68, %70 : vector<1x128xf32>
    %cst_34 = arith.constant 1.000000e-16 : f32
    %72 = vector.broadcast %cst_34 : f32 to vector<1x128xf32>
    %73 = arith.maximumf %71, %72 : vector<1x128xf32>
    %74 = math.rsqrt %73 : vector<1x128xf32>
    %75 = arith.mulf %65, %74 : vector<1x128xf32>
    %76 = vector.broadcast %56 : vector<1x1xf32> to vector<1x128xf32>
    %77 = arith.mulf %76, %75 : vector<1x128xf32>
    %cst_35 = arith.constant dense<0xFF800000> : vector<1xf32>
    %78 = vector.multi_reduction <maximumf>, %77, %cst_35 [1] : vector<1x128xf32> to vector<1xf32>
    %79 = vector.shape_cast %78 : vector<1xf32> to vector<1x1xf32>
    %80 = vector.broadcast %79 : vector<1x1xf32> to vector<1x128xf32>
    %81 = arith.subf %77, %80 : vector<1x128xf32>
    %82 = math.exp %81 : vector<1x128xf32>
    %cst_36 = arith.constant dense<0.000000e+00> : vector<1xf32>
    %83 = vector.multi_reduction <add>, %82, %cst_36 [1] : vector<1x128xf32> to vector<1xf32>
    %84 = vector.shape_cast %83 : vector<1xf32> to vector<1x1xf32>
    %85 = vector.broadcast %84 : vector<1x1xf32> to vector<1x128xf32>
    %86 = arith.divf %82, %85 : vector<1x128xf32>
    %87 = vector.broadcast %57 : vector<1x1xf32> to vector<1x128xf32>
    %88 = arith.mulf %87, %86 : vector<1x128xf32>
    %cst_37 = arith.constant 1.000000e+00 : f32
    %89 = vector.broadcast %cst_37 : f32 to vector<1x1xf32>
    %90 = arith.subf %89, %57 : vector<1x1xf32>
    %91 = vector.broadcast %90 : vector<1x1xf32> to vector<1x128xf32>
    %92 = arith.mulf %91, %64 : vector<1x128xf32>
    %93 = arith.addf %88, %92 : vector<1x128xf32>
    %94 = vector.extract_strided_slice %52 {offsets = [0, 0], sizes = [1, 1], strides = [1, 1]} : vector<2x3xf32> to vector<1x1xf32>
    %c1_i32 = arith.constant 1 : i32
    %95 = tpu.dynamic_rotate %93 by %c1_i32 dim 1 : vector<1x128xf32>, i32 -> vector<1x128xf32>
    %96 = vector.broadcast %94 : vector<1x1xf32> to vector<1x128xf32>
    %97 = arith.mulf %96, %95 : vector<1x128xf32>
    %98 = vector.extract_strided_slice %52 {offsets = [0, 1], sizes = [1, 1], strides = [1, 1]} : vector<2x3xf32> to vector<1x1xf32>
    %99 = vector.broadcast %98 : vector<1x1xf32> to vector<1x128xf32>
    %100 = arith.mulf %99, %93 : vector<1x128xf32>
    %101 = arith.addf %97, %100 : vector<1x128xf32>
    %102 = vector.extract_strided_slice %52 {offsets = [0, 2], sizes = [1, 1], strides = [1, 1]} : vector<2x3xf32> to vector<1x1xf32>
    %c127_i32 = arith.constant 127 : i32
    %103 = tpu.dynamic_rotate %93 by %c127_i32 dim 1 : vector<1x128xf32>, i32 -> vector<1x128xf32>
    %104 = vector.broadcast %102 : vector<1x1xf32> to vector<1x128xf32>
    %105 = arith.mulf %104, %103 : vector<1x128xf32>
    %106 = arith.addf %101, %105 : vector<1x128xf32>
    %cst_38 = arith.constant 0.000000e+00 : f32
    %107 = vector.broadcast %cst_38 : f32 to vector<1x128xf32>
    %108 = arith.cmpf ogt, %106, %107 : vector<1x128xf32>
    %cst_39 = arith.constant 9.99999935E-39 : f32
    %109 = vector.broadcast %cst_39 : f32 to vector<1x128xf32>
    %110 = arith.maximumf %106, %109 : vector<1x128xf32>
    %111 = math.log %110 : vector<1x128xf32>
    %112 = vector.broadcast %60 : vector<1x1xf32> to vector<1x128xf32>
    %113 = arith.mulf %112, %111 : vector<1x128xf32>
    %114 = math.exp %113 : vector<1x128xf32>
    %cst_40 = arith.constant 0.000000e+00 : f32
    %115 = vector.broadcast %cst_40 : f32 to vector<1x128xf32>
    %116 = arith.select %108, %114, %115 : vector<1x128xi1>, vector<1x128xf32>
    %cst_41 = arith.constant dense<0.000000e+00> : vector<1xf32>
    %117 = vector.multi_reduction <add>, %116, %cst_41 [1] : vector<1x128xf32> to vector<1xf32>
    %118 = vector.shape_cast %117 : vector<1xf32> to vector<1x1xf32>
    %cst_42 = arith.constant 1.000000e-16 : f32
    %119 = vector.broadcast %cst_42 : f32 to vector<1x1xf32>
    %120 = arith.addf %118, %119 : vector<1x1xf32>
    %121 = vector.broadcast %120 : vector<1x1xf32> to vector<1x128xf32>
    %122 = arith.divf %116, %121 : vector<1x128xf32>
    %c0_43 = arith.constant 0 : index
    %c0_44 = arith.constant 0 : index
    %c0_45 = arith.constant 0 : index
    %c0_46 = arith.constant 0 : index
    %123 = vector.load %arg9[%c0_43, %c0_44, %c0_45, %c0_46] : memref<1x1x2x128xf32, #tpu.memory_space<vmem>>, vector<1x1x1x128xf32>
    %124 = vector.shape_cast %123 : vector<1x1x1x128xf32> to vector<1x128xf32>
    %125 = vector.shape_cast %122 : vector<1x128xf32> to vector<1x1x1x128xf32>
    tpu.vector_store %arg9[%c0_43, %c0_44, %c0_45, %c0_46], %125 {strides = array<i32>} : memref<1x1x2x128xf32, #tpu.memory_space<vmem>>, vector<1x1x1x128xf32>,
    %c0_47 = arith.constant 0 : index
    %c0_48 = arith.constant 0 : index
    %126 = vector.load %arg11[%c0_47, %c0_48] : memref<2x128xf32, #tpu.memory_space<vmem>>, vector<1x128xf32>
    tpu.vector_store %arg11[%c0_47, %c0_48], %122 {strides = array<i32>} : memref<2x128xf32, #tpu.memory_space<vmem>>, vector<1x128xf32>,
    %127 = vector.extract_strided_slice %24 {offsets = [0, 0], sizes = [32, 1], strides = [1, 1]} : vector<32x2xf32> to vector<32x1xf32>
    %128 = vector.extract_strided_slice %25 {offsets = [0, 0], sizes = [32, 1], strides = [1, 1]} : vector<32x2xf32> to vector<32x1xf32>
    %129 = vector.broadcast %127 : vector<32x1xf32> to vector<32x128xf32>
    %130 = vector.broadcast %122 : vector<1x128xf32> to vector<32x128xf32>
    %131 = arith.mulf %129, %130 : vector<32x128xf32>
    %cst_49 = arith.constant 1.000000e+00 : f32
    %132 = vector.broadcast %cst_49 : f32 to vector<32x128xf32>
    %133 = arith.subf %132, %131 : vector<32x128xf32>
    %134 = arith.mulf %62, %133 : vector<32x128xf32>
    %135 = vector.broadcast %128 : vector<32x1xf32> to vector<32x128xf32>
    %136 = vector.broadcast %122 : vector<1x128xf32> to vector<32x128xf32>
    %137 = arith.mulf %135, %136 : vector<32x128xf32>
    %138 = arith.addf %134, %137 : vector<32x128xf32>
    %c0_50 = arith.constant 0 : index
    %c0_51 = arith.constant 0 : index
    %c0_52 = arith.constant 0 : index
    %c0_53 = arith.constant 0 : index
    %139 = vector.load %arg10[%c0_50, %c0_51, %c0_52, %c0_53] : memref<1x2x32x128xf32, #tpu.memory_space<vmem>>, vector<1x1x32x128xf32>
    %140 = vector.shape_cast %139 : vector<1x1x32x128xf32> to vector<32x128xf32>
    %141 = vector.shape_cast %138 : vector<32x128xf32> to vector<1x1x32x128xf32>
    tpu.vector_store %arg10[%c0_50, %c0_51, %c0_52, %c0_53], %141 {strides = array<i32>} : memref<1x2x32x128xf32, #tpu.memory_space<vmem>>, vector<1x1x32x128xf32>,
    %142 = vector.extract_strided_slice %35 {offsets = [1, 0], sizes = [1, 1], strides = [1, 1]} : vector<2x6xf32> to vector<1x1xf32>
    %143 = vector.extract_strided_slice %42 {offsets = [1, 1], sizes = [1, 1], strides = [1, 1]} : vector<2x6xf32> to vector<1x1xf32>
    %144 = vector.extract_strided_slice %35 {offsets = [1, 5], sizes = [1, 1], strides = [1, 1]} : vector<2x6xf32> to vector<1x1xf32>
    %cst_54 = arith.constant 1.000000e+00 : f32
    %145 = vector.broadcast %cst_54 : f32 to vector<1x1xf32>
    %146 = arith.addf %145, %144 : vector<1x1xf32>
    %c0_55 = arith.constant 0 : index
    %c1 = arith.constant 1 : index
    %c0_56 = arith.constant 0 : index
    %c0_57 = arith.constant 0 : index
    %147 = vector.load %arg10[%c0_55, %c1, %c0_56, %c0_57] : memref<1x2x32x128xf32, #tpu.memory_space<vmem>>, vector<1x1x32x128xf32>
    %148 = vector.shape_cast %147 : vector<1x1x32x128xf32> to vector<32x128xf32>
    %149 = vector.extract_strided_slice %10 {offsets = [1, 0], sizes = [1, 32], strides = [1, 1]} : vector<2x32xf32> to vector<1x32xf32>
    %c1_58 = arith.constant 1 : index
    %c0_59 = arith.constant 0 : index
    %150 = vector.load %arg11[%c1_58, %c0_59] : memref<2x128xf32, #tpu.memory_space<vmem>>, vector<1x128xf32>
    %cst_60 = arith.constant dense<0.000000e+00> : vector<1x128xf32>
    %151 = tpu.matmul %149, %148, %cst_60 {dimension_numbers = #tpu.dot_dimension_numbers<[1], [0], [0], [1], [0, 0, 1, 1], [], []>} : vector<1x32xf32>, vector<32x128xf32>, vector<1x128xf32> -> vector<1x128xf32>
    %152 = arith.mulf %148, %148 : vector<32x128xf32>
    %cst_61 = arith.constant dense<0.000000e+00> : vector<128xf32>
    %153 = vector.multi_reduction <add>, %152, %cst_61 [0] : vector<32x128xf32> to vector<128xf32>
    %154 = vector.shape_cast %153 : vector<128xf32> to vector<1x128xf32>
    %155 = vector.extract_strided_slice %55 {offsets = [1, 0], sizes = [1, 1], strides = [1, 1]} : vector<2x1xf32> to vector<1x1xf32>
    %156 = vector.broadcast %155 : vector<1x1xf32> to vector<1x128xf32>
    %157 = arith.mulf %154, %156 : vector<1x128xf32>
    %cst_62 = arith.constant 1.000000e-16 : f32
    %158 = vector.broadcast %cst_62 : f32 to vector<1x128xf32>
    %159 = arith.maximumf %157, %158 : vector<1x128xf32>
    %160 = math.rsqrt %159 : vector<1x128xf32>
    %161 = arith.mulf %151, %160 : vector<1x128xf32>
    %162 = vector.broadcast %142 : vector<1x1xf32> to vector<1x128xf32>
    %163 = arith.mulf %162, %161 : vector<1x128xf32>
    %cst_63 = arith.constant dense<0xFF800000> : vector<1xf32>
    %164 = vector.multi_reduction <maximumf>, %163, %cst_63 [1] : vector<1x128xf32> to vector<1xf32>
    %165 = vector.shape_cast %164 : vector<1xf32> to vector<1x1xf32>
    %166 = vector.broadcast %165 : vector<1x1xf32> to vector<1x128xf32>
    %167 = arith.subf %163, %166 : vector<1x128xf32>
    %168 = math.exp %167 : vector<1x128xf32>
    %cst_64 = arith.constant dense<0.000000e+00> : vector<1xf32>
    %169 = vector.multi_reduction <add>, %168, %cst_64 [1] : vector<1x128xf32> to vector<1xf32>
    %170 = vector.shape_cast %169 : vector<1xf32> to vector<1x1xf32>
    %171 = vector.broadcast %170 : vector<1x1xf32> to vector<1x128xf32>
    %172 = arith.divf %168, %171 : vector<1x128xf32>
    %173 = vector.broadcast %143 : vector<1x1xf32> to vector<1x128xf32>
    %174 = arith.mulf %173, %172 : vector<1x128xf32>
    %cst_65 = arith.constant 1.000000e+00 : f32
    %175 = vector.broadcast %cst_65 : f32 to vector<1x1xf32>
    %176 = arith.subf %175, %143 : vector<1x1xf32>
    %177 = vector.broadcast %176 : vector<1x1xf32> to vector<1x128xf32>
    %178 = arith.mulf %177, %150 : vector<1x128xf32>
    %179 = arith.addf %174, %178 : vector<1x128xf32>
    %180 = vector.extract_strided_slice %52 {offsets = [1, 0], sizes = [1, 1], strides = [1, 1]} : vector<2x3xf32> to vector<1x1xf32>
    %c1_i32_66 = arith.constant 1 : i32
    %181 = tpu.dynamic_rotate %179 by %c1_i32_66 dim 1 : vector<1x128xf32>, i32 -> vector<1x128xf32>
    %182 = vector.broadcast %180 : vector<1x1xf32> to vector<1x128xf32>
    %183 = arith.mulf %182, %181 : vector<1x128xf32>
    %184 = vector.extract_strided_slice %52 {offsets = [1, 1], sizes = [1, 1], strides = [1, 1]} : vector<2x3xf32> to vector<1x1xf32>
    %185 = vector.broadcast %184 : vector<1x1xf32> to vector<1x128xf32>
    %186 = arith.mulf %185, %179 : vector<1x128xf32>
    %187 = arith.addf %183, %186 : vector<1x128xf32>
    %188 = vector.extract_strided_slice %52 {offsets = [1, 2], sizes = [1, 1], strides = [1, 1]} : vector<2x3xf32> to vector<1x1xf32>
    %c127_i32_67 = arith.constant 127 : i32
    %189 = tpu.dynamic_rotate %179 by %c127_i32_67 dim 1 : vector<1x128xf32>, i32 -> vector<1x128xf32>
    %190 = vector.broadcast %188 : vector<1x1xf32> to vector<1x128xf32>
    %191 = arith.mulf %190, %189 : vector<1x128xf32>
    %192 = arith.addf %187, %191 : vector<1x128xf32>
    %cst_68 = arith.constant 0.000000e+00 : f32
    %193 = vector.broadcast %cst_68 : f32 to vector<1x128xf32>
    %194 = arith.cmpf ogt, %192, %193 : vector<1x128xf32>
    %cst_69 = arith.constant 9.99999935E-39 : f32
    %195 = vector.broadcast %cst_69 : f32 to vector<1x128xf32>
    %196 = arith.maximumf %192, %195 : vector<1x128xf32>
    %197 = math.log %196 : vector<1x128xf32>
    %198 = vector.broadcast %146 : vector<1x1xf32> to vector<1x128xf32>
    %199 = arith.mulf %198, %197 : vector<1x128xf32>
    %200 = math.exp %199 : vector<1x128xf32>
    %cst_70 = arith.constant 0.000000e+00 : f32
    %201 = vector.broadcast %cst_70 : f32 to vector<1x128xf32>
    %202 = arith.select %194, %200, %201 : vector<1x128xi1>, vector<1x128xf32>
    %cst_71 = arith.constant dense<0.000000e+00> : vector<1xf32>
    %203 = vector.multi_reduction <add>, %202, %cst_71 [1] : vector<1x128xf32> to vector<1xf32>
    %204 = vector.shape_cast %203 : vector<1xf32> to vector<1x1xf32>
    %cst_72 = arith.constant 1.000000e-16 : f32
    %205 = vector.broadcast %cst_72 : f32 to vector<1x1xf32>
    %206 = arith.addf %204, %205 : vector<1x1xf32>
    %207 = vector.broadcast %206 : vector<1x1xf32> to vector<1x128xf32>
    %208 = arith.divf %202, %207 : vector<1x128xf32>
    %c0_73 = arith.constant 0 : index
    %c0_74 = arith.constant 0 : index
    %c1_75 = arith.constant 1 : index
    %c0_76 = arith.constant 0 : index
    %209 = vector.load %arg9[%c0_73, %c0_74, %c1_75, %c0_76] : memref<1x1x2x128xf32, #tpu.memory_space<vmem>>, vector<1x1x1x128xf32>
    %210 = vector.shape_cast %209 : vector<1x1x1x128xf32> to vector<1x128xf32>
    %211 = vector.shape_cast %208 : vector<1x128xf32> to vector<1x1x1x128xf32>
    tpu.vector_store %arg9[%c0_73, %c0_74, %c1_75, %c0_76], %211 {strides = array<i32>} : memref<1x1x2x128xf32, #tpu.memory_space<vmem>>, vector<1x1x1x128xf32>,
    %c1_77 = arith.constant 1 : index
    %c0_78 = arith.constant 0 : index
    %212 = vector.load %arg11[%c1_77, %c0_78] : memref<2x128xf32, #tpu.memory_space<vmem>>, vector<1x128xf32>
    tpu.vector_store %arg11[%c1_77, %c0_78], %208 {strides = array<i32>} : memref<2x128xf32, #tpu.memory_space<vmem>>, vector<1x128xf32>,
    %213 = vector.extract_strided_slice %24 {offsets = [0, 1], sizes = [32, 1], strides = [1, 1]} : vector<32x2xf32> to vector<32x1xf32>
    %214 = vector.extract_strided_slice %25 {offsets = [0, 1], sizes = [32, 1], strides = [1, 1]} : vector<32x2xf32> to vector<32x1xf32>
    %215 = vector.broadcast %213 : vector<32x1xf32> to vector<32x128xf32>
    %216 = vector.broadcast %208 : vector<1x128xf32> to vector<32x128xf32>
    %217 = arith.mulf %215, %216 : vector<32x128xf32>
    %cst_79 = arith.constant 1.000000e+00 : f32
    %218 = vector.broadcast %cst_79 : f32 to vector<32x128xf32>
    %219 = arith.subf %218, %217 : vector<32x128xf32>
    %220 = arith.mulf %148, %219 : vector<32x128xf32>
    %221 = vector.broadcast %214 : vector<32x1xf32> to vector<32x128xf32>
    %222 = vector.broadcast %208 : vector<1x128xf32> to vector<32x128xf32>
    %223 = arith.mulf %221, %222 : vector<32x128xf32>
    %224 = arith.addf %220, %223 : vector<32x128xf32>
    %c0_80 = arith.constant 0 : index
    %c1_81 = arith.constant 1 : index
    %c0_82 = arith.constant 0 : index
    %c0_83 = arith.constant 0 : index
    %225 = vector.load %arg10[%c0_80, %c1_81, %c0_82, %c0_83] : memref<1x2x32x128xf32, #tpu.memory_space<vmem>>, vector<1x1x32x128xf32>
    %226 = vector.shape_cast %225 : vector<1x1x32x128xf32> to vector<32x128xf32>
    %227 = vector.shape_cast %224 : vector<32x128xf32> to vector<1x1x32x128xf32>
    tpu.vector_store %arg10[%c0_80, %c1_81, %c0_82, %c0_83], %227 {strides = array<i32>} : memref<1x2x32x128xf32, #tpu.memory_space<vmem>>, vector<1x1x32x128xf32>,
    return
  }
  func.func @transform_0(%arg0: i32, %arg1: i32) -> (i32, i32, i32, i32) {
    %c0_i32 = arith.constant 0 : i32
    %c0_i32_0 = arith.constant 0 : i32
    %c0_i32_1 = arith.constant 0 : i32
    return %arg1, %arg0, %c0_i32, %c0_i32_0 : i32, i32, i32, i32
  }
  func.func @transform_1(%arg0: i32, %arg1: i32) -> (i32, i32, i32) {
    %c0_i32 = arith.constant 0 : i32
    %c0_i32_0 = arith.constant 0 : i32
    %c0_i32_1 = arith.constant 0 : i32
    return %arg0, %c0_i32, %c0_i32_0 : i32, i32, i32
  }
  func.func @transform_2(%arg0: i32, %arg1: i32) -> (i32, i32, i32, i32) {
    %c0_i32 = arith.constant 0 : i32
    %c0_i32_0 = arith.constant 0 : i32
    %c0_i32_1 = arith.constant 0 : i32
    %c0_i32_2 = arith.constant 0 : i32
    return %arg0, %c0_i32, %c0_i32_0, %c0_i32_1 : i32, i32, i32, i32
  }
  func.func @transform_3(%arg0: i32, %arg1: i32) -> (i32, i32) {
    %c0_i32 = arith.constant 0 : i32
    %c0_i32_0 = arith.constant 0 : i32
    %c0_i32_1 = arith.constant 0 : i32
    return %c0_i32, %c0_i32_0 : i32, i32
  }
  func.func @transform_4(%arg0: i32, %arg1: i32) -> (i32, i32) {
    %c0_i32 = arith.constant 0 : i32
    %c0_i32_0 = arith.constant 0 : i32
    %c0_i32_1 = arith.constant 0 : i32
    return %c0_i32, %c0_i32_0 : i32, i32
  }
  func.func @transform_5(%arg0: i32, %arg1: i32) -> (i32, i32) {
    %c0_i32 = arith.constant 0 : i32
    %c0_i32_0 = arith.constant 0 : i32
    %c0_i32_1 = arith.constant 0 : i32
    return %c0_i32, %c0_i32_0 : i32, i32
  }
  func.func @transform_6(%arg0: i32, %arg1: i32) -> (i32, i32) {
    %c0_i32 = arith.constant 0 : i32
    %c0_i32_0 = arith.constant 0 : i32
    %c0_i32_1 = arith.constant 0 : i32
    return %c0_i32, %c0_i32_0 : i32, i32
  }
  func.func @transform_7(%arg0: i32, %arg1: i32) -> (i32, i32, i32, i32) {
    %c0_i32 = arith.constant 0 : i32
    %c0_i32_0 = arith.constant 0 : i32
    %c0_i32_1 = arith.constant 0 : i32
    return %arg1, %arg0, %c0_i32, %c0_i32_0 : i32, i32, i32, i32
  }
  func.func @transform_8(%arg0: i32, %arg1: i32) -> (i32, i32, i32, i32) {
    %c0_i32 = arith.constant 0 : i32
    %c0_i32_0 = arith.constant 0 : i32
    %c0_i32_1 = arith.constant 0 : i32
    %c0_i32_2 = arith.constant 0 : i32
    return %arg0, %c0_i32, %c0_i32_0, %c0_i32_1 : i32, i32, i32, i32
  }
}

</mosaic_0001>

<llo_original>
// kernel: ntm_write_head_seq.1
$region0: #{ntm_write_head_seq.1}
  #allocation0 [shape = 'u32[]', space=smem, size = 0x4, offset = 0x4, fixed_abs, tag = 'smem constant byte address 0x4 - core index']
  #allocation1 [shape = 'u32[72,128]{1,0:T(1,128)}', space=vmem, size = 0x9000, scoped, tag = 'internal scratch']
  #allocation2 [shape = 'f32[2,128]{1,0:T(2,128)}', space=vmem, size = 0x400, scoped, tag = 'scratch operand']
  %s0 = inlined_call_operand.vmem [shape: f32[8,1,2,32], index: 0, kind: input, shape index: {}]
  %s1 = inlined_call_operand.vmem [shape: f32[1,2,128], index: 1, kind: input, shape index: {}]
  %s2 = inlined_call_operand.vmem [shape: f32[1,2,32,128], index: 2, kind: input, shape index: {}, may-alias: {2,8}]
  %s3 = inlined_call_operand.vmem [shape: f32[32,38], index: 3, kind: input, shape index: {}]
  %s4 = inlined_call_operand.vmem [shape: f32[1,38], index: 4, kind: input, shape index: {}]
  %s5 = inlined_call_operand.vmem [shape: f32[64,32], index: 5, kind: input, shape index: {}]
  %s6 = inlined_call_operand.vmem [shape: f32[64,1], index: 6, kind: input, shape index: {}]
  %s7 = inlined_call_operand.hbm [shape: f32[8,1,2,128], index: 7, kind: output, shape index: {0}]
  %s8 = inlined_call_operand.vmem [shape: f32[1,2,32,128], index: 8, kind: output, shape index: {1}, may-alias: {2,8}]
  %9 = xla_tuple %s7, %s8
  %s10 = sld [smem:[#allocation0]]
  $region73: #{ntm_write_head_seq.1} parent=0
    _
  %s12 = ssub.s32 1, %s10
  %s13 = scalar_select 0, %s12, %s10
  $region1: #{ntm_write_head_seq.1} parent=0
    #allocation3 [shape = 'u8[2048]{0}', space=vmem, size = 0x800, scoped, tag = 'output window, operand 0']
    #allocation4 [shape = 's32[2]{0}', space=sflag, size = 0x8, scoped, tag = 'scoped memory for ntm_write_head_seq.1']
    %14 = vsyncpa [#allocation4], 0
    %s15 = scalar_lea.sflag [#allocation4], 1
    %16 = vsyncpa %s15, 0
    loop: start=0, step=1, limit=10
    $region2: #{ntm_write_head_seq.1} parent=1 // loop_pre_header
      _
    $region3: #{ntm_write_head_seq.1} parent=1 // loop_header
      %s18 = sphi 0, %s22
      %p19 = scmp.ge.s32.totalorder %s18, 10
      %s25 = sphi 0, %s37
      %s26 = sphi 0, %s33
      %s27 = sphi 0, %s25
      %s28 = sphi 0, %s26
      %s29 = sphi 0, %s27
      %s30 = sphi 0, %s28
      %s42 = sphi 0, %s44
      %s45 = sphi 0, %s42
      %s46 = sphi 0, %s45
      %s62 = sphi 0, %s46
      %s68 = sphi 0, %s70
      %s71 = sphi 0, %s68
      %s72 = sphi 0, %s71
      %s88 = sphi 0, %s72
      %s94 = sphi 0, %s96
      %s97 = sphi 0, %s94
      %s98 = sphi 0, %s97
      %s114 = sphi 0, %s98
      %s118 = sphi 0, %s118
      %s120 = sphi 0, %s118
      %s121 = sphi 0, %s120
      %s135 = sphi 0, %s121
      %s139 = sphi 0, %s139
      %s141 = sphi 0, %s139
      %s142 = sphi 0, %s141
      %s156 = sphi 0, %s142
      %s160 = sphi 0, %s160
      %s162 = sphi 0, %s160
      %s163 = sphi 0, %s162
      %s177 = sphi 0, %s163
      %s181 = sphi 0, %s181
      %s183 = sphi 0, %s181
      %s184 = sphi 0, %s183
      %s198 = sphi 0, %s184
      %s206 = sphi 0, %s208
      %s209 = sphi 0, %s206
      %s210 = sphi 0, %s209
      %s226 = sphi 0, %s210
      %s232 = sphi 0, %s234
      %s235 = sphi 0, %s232
      %s236 = sphi 0, %s235
      %s252 = sphi 0, %s236
    $region4: #{ntm_write_head_seq.1} parent=1 // loop_header_branch
      %21 = sbr.rel (%p19) target = $region8
    $region5: #{ntm_write_head_seq.1} parent=1 // loop_body
      %s23 = ssub.s32 %s18, 1
      %s24 = ssub.s32 %s18, 2
      %s31 = sadd.s32 1, %s26
      %p32 = scmp.ge.s32.totalorder %s31, 8
      %s33 = scalar_select %p32, 0, %s31
      %s34 = sadd.s32 1, %s25
      %s35 = scalar_select %p32, %s34, %s25
      %p36 = scmp.ge.s32.totalorder %s35, 1
      %s37 = scalar_select %p36, 0, %s35
      %s38 = ssub.s32 %s26, %s33
      %s39 = ssub.s32 %s25, %s37
      %s40 = sor.u32 %s38, %s39
      %p41 = scmp.eq.s32.totalorder %s40, 0
      %s43 = sadd.s32 %s42, 1
      %s44 = scalar_select %p41, %s42, %s43
      %p47 = pneg %p41
      %p48 = scmp.eq.s32.totalorder %s18, 7
      %p49 = por %p47, %p48
      %p50 = scmp.ne.s32.totalorder %s42, %s45
      %p51 = scmp.eq.s32.totalorder %s18, 0
      %p52 = por %p50, %p51
      %p53 = scmp.ne.s32.totalorder %s42, %s45
      %p54 = scmp.eq.s32.totalorder %s23, 7
      %p55 = por %p53, %p54
      %p56 = scmp.ne.s32.totalorder %s45, %s46
      %p57 = scmp.eq.s32.totalorder %s23, 0
      %p58 = por %p56, %p57
      %p59 = scmp.ne.s32.totalorder %s45, %s46
      %p60 = scmp.eq.s32.totalorder %s24, 7
      %p61 = por %p59, %p60
      %p63 = scmp.ne.s32.totalorder %s46, %s62
      %p64 = scmp.eq.s32.totalorder %s24, 0
      %p65 = por %p63, %p64
      %s66 = ssub.s32 %s25, %s37
      %p67 = scmp.eq.s32.totalorder %s66, 0
      %s69 = sadd.s32 %s68, 1
      %s70 = scalar_select %p67, %s68, %s69
      %p73 = pneg %p67
      %p74 = scmp.eq.s32.totalorder %s18, 7
      %p75 = por %p73, %p74
      %p76 = scmp.ne.s32.totalorder %s68, %s71
      %p77 = scmp.eq.s32.totalorder %s18, 0
      %p78 = por %p76, %p77
      %p79 = scmp.ne.s32.totalorder %s68, %s71
      %p80 = scmp.eq.s32.totalorder %s23, 7
      %p81 = por %p79, %p80
      %p82 = scmp.ne.s32.totalorder %s71, %s72
      %p83 = scmp.eq.s32.totalorder %s23, 0
      %p84 = por %p82, %p83
      %p85 = scmp.ne.s32.totalorder %s71, %s72
      %p86 = scmp.eq.s32.totalorder %s24, 7
      %p87 = por %p85, %p86
      %p89 = scmp.ne.s32.totalorder %s72, %s88
      %p90 = scmp.eq.s32.totalorder %s24, 0
      %p91 = por %p89, %p90
      %s92 = ssub.s32 %s25, %s37
      %p93 = scmp.eq.s32.totalorder %s92, 0
      %s95 = sadd.s32 %s94, 1
      %s96 = scalar_select %p93, %s94, %s95
      %p99 = pneg %p93
      %p100 = scmp.eq.s32.totalorder %s18, 7
      %p101 = por %p99, %p100
      %p102 = scmp.ne.s32.totalorder %s94, %s97
      %p103 = scmp.eq.s32.totalorder %s18, 0
      %p104 = por %p102, %p103
      %p105 = scmp.ne.s32.totalorder %s94, %s97
      %p106 = scmp.eq.s32.totalorder %s23, 7
      %p107 = por %p105, %p106
      %p108 = scmp.ne.s32.totalorder %s97, %s98
      %p109 = scmp.eq.s32.totalorder %s23, 0
      %p110 = por %p108, %p109
      %p111 = scmp.ne.s32.totalorder %s97, %s98
      %p112 = scmp.eq.s32.totalorder %s24, 7
      %p113 = por %p111, %p112
      %p115 = scmp.ne.s32.totalorder %s98, %s114
      %p116 = scmp.eq.s32.totalorder %s24, 0
      %p117 = por %p115, %p116
      %s119 = sadd.s32 %s118, 1
      %p122 = scmp.eq.s32.totalorder %s18, 7
      %p123 = scmp.ne.s32.totalorder %s118, %s120
      %p124 = scmp.eq.s32.totalorder %s18, 0
      %p125 = por %p123, %p124
      %p126 = scmp.ne.s32.totalorder %s118, %s120
      %p127 = scmp.eq.s32.totalorder %s23, 7
      %p128 = por %p126, %p127
      %p129 = scmp.ne.s32.totalorder %s120, %s121
      %p130 = scmp.eq.s32.totalorder %s23, 0
      %p131 = por %p129, %p130
      %p132 = scmp.ne.s32.totalorder %s120, %s121
      %p133 = scmp.eq.s32.totalorder %s24, 7
      %p134 = por %p132, %p133
      %p136 = scmp.ne.s32.totalorder %s121, %s135
      %p137 = scmp.eq.s32.totalorder %s24, 0
      %p138 = por %p136, %p137
      %s140 = sadd.s32 %s139, 1
      %p143 = scmp.eq.s32.totalorder %s18, 7
      %p144 = scmp.ne.s32.totalorder %s139, %s141
      %p145 = scmp.eq.s32.totalorder %s18, 0
      %p146 = por %p144, %p145
      %p147 = scmp.ne.s32.totalorder %s139, %s141
      %p148 = scmp.eq.s32.totalorder %s23, 7
      %p149 = por %p147, %p148
      %p150 = scmp.ne.s32.totalorder %s141, %s142
      %p151 = scmp.eq.s32.totalorder %s23, 0
      %p152 = por %p150, %p151
      %p153 = scmp.ne.s32.totalorder %s141, %s142
      %p154 = scmp.eq.s32.totalorder %s24, 7
      %p155 = por %p153, %p154
      %p157 = scmp.ne.s32.totalorder %s142, %s156
      %p158 = scmp.eq.s32.totalorder %s24, 0
      %p159 = por %p157, %p158
      %s161 = sadd.s32 %s160, 1
      %p164 = scmp.eq.s32.totalorder %s18, 7
      %p165 = scmp.ne.s32.totalorder %s160, %s162
      %p166 = scmp.eq.s32.totalorder %s18, 0
      %p167 = por %p165, %p166
      %p168 = scmp.ne.s32.totalorder %s160, %s162
      %p169 = scmp.eq.s32.totalorder %s23, 7
      %p170 = por %p168, %p169
      %p171 = scmp.ne.s32.totalorder %s162, %s163
      %p172 = scmp.eq.s32.totalorder %s23, 0
      %p173 = por %p171, %p172
      %p174 = scmp.ne.s32.totalorder %s162, %s163
      %p175 = scmp.eq.s32.totalorder %s24, 7
      %p176 = por %p174, %p175
      %p178 = scmp.ne.s32.totalorder %s163, %s177
      %p179 = scmp.eq.s32.totalorder %s24, 0
      %p180 = por %p178, %p179
      %s182 = sadd.s32 %s181, 1
      %p185 = scmp.eq.s32.totalorder %s18, 7
      %p186 = scmp.ne.s32.totalorder %s181, %s183
      %p187 = scmp.eq.s32.totalorder %s18, 0
      %p188 = por %p186, %p187
      %p189 = scmp.ne.s32.totalorder %s181, %s183
      %p190 = scmp.eq.s32.totalorder %s23, 7
      %p191 = por %p189, %p190
      %p192 = scmp.ne.s32.totalorder %s183, %s184
      %p193 = scmp.eq.s32.totalorder %s23, 0
      %p194 = por %p192, %p193
      %p195 = scmp.ne.s32.totalorder %s183, %s184
      %p196 = scmp.eq.s32.totalorder %s24, 7
      %p197 = por %p195, %p196
      %p199 = scmp.ne.s32.totalorder %s184, %s198
      %p200 = scmp.eq.s32.totalorder %s24, 0
      %p201 = por %p199, %p200
      %s202 = ssub.s32 %s26, %s33
      %s203 = ssub.s32 %s25, %s37
      %s204 = sor.u32 %s202, %s203
      %p205 = scmp.eq.s32.totalorder %s204, 0
      %s207 = sadd.s32 %s206, 1
      %s208 = scalar_select %p205, %s206, %s207
      %p211 = pneg %p205
      %p212 = scmp.eq.s32.totalorder %s18, 7
      %p213 = por %p211, %p212
      %p214 = scmp.ne.s32.totalorder %s206, %s209
      %p215 = scmp.eq.s32.totalorder %s18, 0
      %p216 = por %p214, %p215
      %p217 = scmp.ne.s32.totalorder %s206, %s209
      %p218 = scmp.eq.s32.totalorder %s23, 7
      %p219 = por %p217, %p218
      %p220 = scmp.ne.s32.totalorder %s209, %s210
      %p221 = scmp.eq.s32.totalorder %s23, 0
      %p222 = por %p220, %p221
      %p223 = scmp.ne.s32.totalorder %s209, %s210
      %p224 = scmp.eq.s32.totalorder %s24, 7
      %p225 = por %p223, %p224
      %p227 = scmp.ne.s32.totalorder %s210, %s226
      %p228 = scmp.eq.s32.totalorder %s24, 0
      %p229 = por %p227, %p228
      %s230 = ssub.s32 %s25, %s37
      %p231 = scmp.eq.s32.totalorder %s230, 0
      %s233 = sadd.s32 %s232, 1
      %s234 = scalar_select %p231, %s232, %s233
      %p237 = pneg %p231
      %p238 = scmp.eq.s32.totalorder %s18, 7
      %p239 = por %p237, %p238
      %p240 = scmp.ne.s32.totalorder %s232, %s235
      %p241 = scmp.eq.s32.totalorder %s18, 0
      %p242 = por %p240, %p241
      %p243 = scmp.ne.s32.totalorder %s232, %s235
      %p244 = scmp.eq.s32.totalorder %s23, 7
      %p245 = por %p243, %p244
      %p246 = scmp.ne.s32.totalorder %s235, %s236
      %p247 = scmp.eq.s32.totalorder %s23, 0
      %p248 = por %p246, %p247
      %p249 = scmp.ne.s32.totalorder %s235, %s236
      %p250 = scmp.eq.s32.totalorder %s24, 7
      %p251 = por %p249, %p250
      %p253 = scmp.ne.s32.totalorder %s236, %s252
      %p254 = scmp.eq.s32.totalorder %s24, 0
      %p255 = por %p253, %p254
      %p256 = scmp.le.s32.totalorder 1, %s18
      %p257 = scmp.lt.s32.totalorder %s18, 9
      %p258 = pnand %p256, %p257
      %p259 = pneg %p258
      // Predicated region
      $region9: #{ntm_write_head_seq.1} parent=5 // pred_check
        _
      $region10: #{ntm_write_head_seq.1} parent=5 // pred_check_branch
        %261 = sbr.rel (%p258) target = $region12
      $region11: #{ntm_write_head_seq.1} parent=5 // pred_region
        %s262 = ssub.s32 %s18, 1
        // Predicated region
        $region13: #{ntm_write_head_seq.1} parent=11 // pred_check
          %p263 = pneg %p84
        $region14: #{ntm_write_head_seq.1} parent=11 // pred_check_branch
          %265 = sbr.rel (%p263) target = $region16
        $region15: #{ntm_write_head_seq.1} parent=11 // pred_region
          %p266 = scmp.lt.s32.totalorder %s27, 0
          %s267 = scalar_select %p266, %s27, 0
          %s268 = smul.addr %s267, 2
          %s269 = scalar_lea.vmem %s1, %s268
        $region16: #{ntm_write_head_seq.1} parent=11 // pred_fallthru
          _
        // Predicated region
        $region17: #{ntm_write_head_seq.1} parent=11 // pred_check
          %p270 = pneg %p110
        $region18: #{ntm_write_head_seq.1} parent=11 // pred_check_branch
          %272 = sbr.rel (%p270) target = $region20
        $region19: #{ntm_write_head_seq.1} parent=11 // pred_region
          %p273 = scmp.lt.s32.totalorder %s27, 0
          %s274 = scalar_select %p273, %s27, 0
          %s275 = smul.addr %s274, 8
          %s276 = smul.addr %s275, 8
          %s277 = scalar_lea.vmem %s2, %s276
        $region20: #{ntm_write_head_seq.1} parent=11 // pred_fallthru
          _
        // Predicated region
        $region21: #{ntm_write_head_seq.1} parent=11 // pred_check
          %p278 = pneg %p131
        $region22: #{ntm_write_head_seq.1} parent=11 // pred_check_branch
          %280 = sbr.rel (%p278) target = $region24
        $region23: #{ntm_write_head_seq.1} parent=11 // pred_region
          _
        $region24: #{ntm_write_head_seq.1} parent=11 // pred_fallthru
          _
        // Predicated region
        $region25: #{ntm_write_head_seq.1} parent=11 // pred_check
          %p281 = pneg %p152
        $region26: #{ntm_write_head_seq.1} parent=11 // pred_check_branch
          %283 = sbr.rel (%p281) target = $region28
        $region27: #{ntm_write_head_seq.1} parent=11 // pred_region
          _
        $region28: #{ntm_write_head_seq.1} parent=11 // pred_fallthru
          _
        // Predicated region
        $region29: #{ntm_write_head_seq.1} parent=11 // pred_check
          %p284 = pneg %p173
        $region30: #{ntm_write_head_seq.1} parent=11 // pred_check_branch
          %286 = sbr.rel (%p284) target = $region32
        $region31: #{ntm_write_head_seq.1} parent=11 // pred_region
          _
        $region32: #{ntm_write_head_seq.1} parent=11 // pred_fallthru
          _
        // Predicated region
        $region33: #{ntm_write_head_seq.1} parent=11 // pred_check
          %p287 = pneg %p194
        $region34: #{ntm_write_head_seq.1} parent=11 // pred_check_branch
          %289 = sbr.rel (%p287) target = $region36
        $region35: #{ntm_write_head_seq.1} parent=11 // pred_region
          _
        $region36: #{ntm_write_head_seq.1} parent=11 // pred_fallthru
          _
      $region12: #{ntm_write_head_seq.1} parent=5 // pred_fallthru
        _
      %p290 = scmp.lt.s32.totalorder %s18, 8
      // Predicated region
      $region37: #{ntm_write_head_seq.1} parent=5 // pred_check
        %p291 = pneg %p290
      $region38: #{ntm_write_head_seq.1} parent=5 // pred_check_branch
        %293 = sbr.rel (%p291) target = $region40
      $region39: #{ntm_write_head_seq.1} parent=5 // pred_region
        // Predicated region
        $region41: #{ntm_write_head_seq.1} parent=39 // pred_check
          %p294 = pneg %p52
        $region42: #{ntm_write_head_seq.1} parent=39 // pred_check_branch
          %296 = sbr.rel (%p294) target = $region44
        $region43: #{ntm_write_head_seq.1} parent=39 // pred_region
          %p297 = scmp.lt.s32.totalorder %s26, 7
          %s298 = scalar_select %p297, %s26, 7
          %p299 = scmp.lt.s32.totalorder %s25, 0
          %s300 = scalar_select %p299, %s25, 0
          %s301 = sadd.s32 %s300, %s298
          %s302 = smul.addr %s301, 2
          %s303 = scalar_lea.vmem %s0, %s302
        $region44: #{ntm_write_head_seq.1} parent=39 // pred_fallthru
          _
      $region40: #{ntm_write_head_seq.1} parent=5 // pred_fallthru
        _
      %p304 = scmp.le.s32.totalorder 1, %s18
      %p305 = scmp.lt.s32.totalorder %s18, 9
      %p306 = pnand %p304, %p305
      %p307 = pneg %p306
      // Predicated region
      $region45: #{ntm_write_head_seq.1} parent=5 // pred_check
        _
      $region46: #{ntm_write_head_seq.1} parent=5 // pred_check_branch
        %309 = sbr.rel (%p306) target = $region48
      $region47: #{ntm_write_head_seq.1} parent=5 // pred_region
        %s310 = ssub.s32 %s18, 1
        %p311 = scmp.lt.s32.totalorder %s28, 7
        %s312 = scalar_select %p311, %s28, 7
        %p313 = scmp.lt.s32.totalorder %s27, 0
        %s314 = scalar_select %p313, %s27, 0
        %s315 = sadd.s32 %s314, %s312
        %s316 = smul.addr %s315, 2
        %s317 = scalar_lea.vmem %s0, %s316
        %p318 = pneg %p58
        %p319 = pneg %p55
        %p320 = scmp.lt.s32.totalorder %s27, 0
        %s321 = scalar_select %p320, %s27, 0
        %s322 = smul.addr %s321, 2
        %s323 = scalar_lea.vmem %s1, %s322
        %p324 = pneg %p84
        %p325 = pneg %p81
        %p326 = scmp.lt.s32.totalorder %s27, 0
        %s327 = scalar_select %p326, %s27, 0
        %s328 = smul.addr %s327, 8
        %s329 = smul.addr %s328, 8
        %s330 = scalar_lea.vmem %s2, %s329
        %p331 = pneg %p110
        %p332 = pneg %p107
        %p333 = pneg %p131
        %p334 = pneg %p128
        %p335 = pneg %p152
        %p336 = pneg %p149
        %p337 = pneg %p173
        %p338 = pneg %p170
        %p339 = pneg %p194
        %p340 = pneg %p191
        %p341 = pneg %p222
        %p342 = pneg %p219
        %s343 = sand.u32 %s209, 1
        %s344 = scalar_lea.sflag [#allocation4], %s343
        %s345 = sand.u32 %s209, 1
        %s346 = smul.addr %s345, 2
        %s347 = scalar_lea.vmem [#allocation3], %s346
        %p348 = pneg %p248
        %p349 = pneg %p245
        %p350 = scmp.lt.s32.totalorder %s27, 0
        %s351 = scalar_select %p350, %s27, 0
        %s352 = smul.addr %s351, 8
        %s353 = smul.addr %s352, 8
        %s354 = scalar_lea.vmem %s8, %s353
        %p355 = scmp.lt.s32.totalorder %s28, 7
        %s356 = scalar_select %p355, %s28, 7
        %p357 = scmp.lt.s32.totalorder %s27, 0
        %s358 = scalar_select %p357, %s27, 0
        %s359 = sadd.s32 %s358, %s356
        %s360 = smul.addr %s359, 2
        %s361 = scalar_lea.vmem %s0, %s360
        %p362 = scmp.lt.s32.totalorder %s27, 0
        %s363 = scalar_select %p362, %s27, 0
        %s364 = smul.addr %s363, 2
        %s365 = scalar_lea.vmem %s1, %s364
        %p366 = scmp.lt.s32.totalorder %s27, 0
        %s367 = scalar_select %p366, %s27, 0
        %s368 = smul.addr %s367, 8
        %s369 = smul.addr %s368, 8
        %s370 = scalar_lea.vmem %s2, %s369
        %p371 = scmp.lt.s32.totalorder %s27, 0
        %s372 = scalar_select %p371, %s27, 0
        %s373 = smul.addr %s372, 8
        %s374 = smul.addr %s373, 8
        %s375 = scalar_lea.vmem %s8, %s374
        %p376 = scmp.eq.s32.totalorder %s28, 0
        // Predicated region
        $region49: #{ntm_write_head_seq.1} parent=47 // pred_check
          %p377 = pneg %p376
        $region50: #{ntm_write_head_seq.1} parent=47 // pred_check_branch
          %379 = sbr.rel (%p377) target = $region52
        $region51: #{ntm_write_head_seq.1} parent=47 // pred_region
          %v380 = vld [vmem:[%s370] sm:$0xff]
          %v381 = vld [vmem:[%s370 + $0x8] sm:$0xff]
          %v382 = vld [vmem:[%s370 + $0x10] sm:$0xff]
          %v383 = vld [vmem:[%s370 + $0x18] sm:$0xff]
          %v384 = vld [vmem:[%s370 + $0x20] sm:$0xff]
          %v385 = vld [vmem:[%s370 + $0x28] sm:$0xff]
          %v386 = vld [vmem:[%s370 + $0x30] sm:$0xff]
          %v387 = vld [vmem:[%s370 + $0x38] sm:$0xff]
          %388 = vst [vmem:[%s375] sm:$0xff] %v380
          %389 = vst [vmem:[%s375 + $0x8] sm:$0xff] %v381
          %390 = vst [vmem:[%s375 + $0x10] sm:$0xff] %v382
          %391 = vst [vmem:[%s375 + $0x18] sm:$0xff] %v383
          %392 = vst [vmem:[%s375 + $0x20] sm:$0xff] %v384
          %393 = vst [vmem:[%s375 + $0x28] sm:$0xff] %v385
          %394 = vst [vmem:[%s375 + $0x30] sm:$0xff] %v386
          %395 = vst [vmem:[%s375 + $0x38] sm:$0xff] %v387
          %v396 = vld [vmem:[%s365] sm:$0x3]
          %397 = vst [vmem:[#allocation2] sm:$0x3] %v396
        $region52: #{ntm_write_head_seq.1} parent=47 // pred_fallthru
          _
        %v398 = vld [vmem:[%s361] sm:$0x3]
        %v399 = vld [vmem:[%s3] sm:$0xff]
        %v400 = vld [vmem:[%s3 + $0x8] sm:$0xff]
        %v401 = vld [vmem:[%s3 + $0x10] sm:$0xff]
        %v402 = vld [vmem:[%s3 + $0x18] sm:$0xff]
        %v403 = vld [vmem:[%s4] sm:$0x1]
        %v405 = vperm.slane %v403, 0
        %vm407 = vcmask 261120
        %v409 = vsel %vm407, %v398, 0
        %411 = vmatpush.msra.mxu0 0.0
        %412 = vmatpush.msra.mxu0 0.0
        %413 = vmatpush.msra.mxu0 0.0
        %414 = vmatpush.msra.mxu0 0.0
        %415 = vmatpush.msra.mxu0 0.0
        %416 = vmatpush.msra.mxu0 0.0
        %417 = vmatpush.msra.mxu0 0.0
        %418 = vmatpush.msra.mxu0 0.0
        %419 = vmatpush.msra.mxu0 0.0
        %420 = vmatpush.msra.mxu0 0.0
        %421 = vmatpush.msra.mxu0 0.0
        %422 = vmatpush.msra.mxu0 0.0
        %423 = vmatpush.msra.mxu0 %v402
        %424 = vmatpush.msra.mxu0 %v401
        %425 = vmatpush.msra.mxu0 %v400
        %426 = vmatpush.msra.mxu0 %v399
        %427 = vmatmul.f32.gmra.mxu0 %v409
        %v428 = vpop.f32.mrf.mxu0
        %v429 = vadd.f32 %v405, %v428
        %430 = vdwg.mxu0
        %v431 = vld [vmem:[%s5] sm:$0xff]
        %v432 = vld [vmem:[%s5 + $0x8] sm:$0xff]
        %v433 = vld [vmem:[%s5 + $0x10] sm:$0xff]
        %v434 = vld [vmem:[%s5 + $0x18] sm:$0xff]
        %v435 = vld [vmem:[%s5 + $0x20] sm:$0xff]
        %v436 = vld [vmem:[%s5 + $0x28] sm:$0xff]
        %v437 = vld [vmem:[%s5 + $0x30] sm:$0xff]
        %v438 = vld [vmem:[%s5 + $0x38] sm:$0xff]
        %v439 = vld [vmem:[%s6] sm:$0xff]
        %v440 = vld [vmem:[%s6 + $0x8] sm:$0xff]
        %v441 = vld [vmem:[%s6 + $0x10] sm:$0xff]
        %v442 = vld [vmem:[%s6 + $0x18] sm:$0xff]
        %v443 = vld [vmem:[%s6 + $0x20] sm:$0xff]
        %v444 = vld [vmem:[%s6 + $0x28] sm:$0xff]
        %v445 = vld [vmem:[%s6 + $0x30] sm:$0xff]
        %v446 = vld [vmem:[%s6 + $0x38] sm:$0xff]
        %448 = vset.pattern.permute.xlu0 0
        %449 = vperm.xlu0 %448, %v439
        %v450 = vpop.permute.xlu0 %449
        %453 = vset.pattern.permute.xlu0 0
        %454 = vperm.xlu0 %453, %v440
        %v455 = vpop.permute.xlu0 %454
        %458 = vset.pattern.permute.xlu0 0
        %459 = vperm.xlu0 %458, %v441
        %v460 = vpop.permute.xlu0 %459
        %463 = vset.pattern.permute.xlu0 0
        %464 = vperm.xlu0 %463, %v442
        %v465 = vpop.permute.xlu0 %464
        %468 = vset.pattern.permute.xlu0 0
        %469 = vperm.xlu0 %468, %v443
        %v470 = vpop.permute.xlu0 %469
        %473 = vset.pattern.permute.xlu0 0
        %474 = vperm.xlu0 %473, %v444
        %v475 = vpop.permute.xlu0 %474
        %478 = vset.pattern.permute.xlu0 0
        %479 = vperm.xlu0 %478, %v445
        %v480 = vpop.permute.xlu0 %479
        %483 = vset.pattern.permute.xlu0 0
        %484 = vperm.xlu0 %483, %v446
        %v485 = vpop.permute.xlu0 %484
        %v488 = vsel %vm407, %v431, 0
        %v491 = vsel %vm407, %v432, 0
        %v494 = vsel %vm407, %v433, 0
        %v497 = vsel %vm407, %v434, 0
        %v500 = vsel %vm407, %v435, 0
        %v503 = vsel %vm407, %v436, 0
        %v506 = vsel %vm407, %v437, 0
        %v509 = vsel %vm407, %v438, 0
        %511 = vmatpush.xpose.msra.mxu0 0.0
        %512 = vmatpush.xpose.msra.mxu0 0.0
        %513 = vmatpush.xpose.msra.mxu0 0.0
        %514 = vmatpush.xpose.msra.mxu0 0.0
        %515 = vmatpush.xpose.msra.mxu0 0.0
        %516 = vmatpush.xpose.msra.mxu0 0.0
        %517 = vmatpush.xpose.msra.mxu0 0.0
        %518 = vmatpush.xpose.msra.mxu0 0.0
        %519 = vmatpush.xpose.msra.mxu0 0.0
        %520 = vmatpush.xpose.msra.mxu0 0.0
        %521 = vmatpush.xpose.msra.mxu0 0.0
        %522 = vmatpush.xpose.msra.mxu0 0.0
        %523 = vmatpush.xpose.msra.mxu0 0.0
        %524 = vmatpush.xpose.msra.mxu0 0.0
        %525 = vmatpush.xpose.msra.mxu0 0.0
        %526 = vmatpush.xpose.msra.mxu0 %v409
        %527 = vmatmul.f32.gmra.mxu0 %v488
        %v528 = vpop.f32.mrf.mxu0
        %v529 = vadd.f32 %v450, %v528
        %530 = vmatmul.f32.gmra.mxu0 %v491
        %v531 = vpop.f32.mrf.mxu0
        %v532 = vadd.f32 %v455, %v531
        %533 = vmatmul.f32.gmra.mxu0 %v494
        %v534 = vpop.f32.mrf.mxu0
        %v535 = vadd.f32 %v460, %v534
        %536 = vmatmul.f32.gmra.mxu0 %v497
        %v537 = vpop.f32.mrf.mxu0
        %v538 = vadd.f32 %v465, %v537
        %539 = vmatmul.f32.gmra.mxu0 %v500
        %v540 = vpop.f32.mrf.mxu0
        %v541 = vadd.f32 %v470, %v540
        %542 = vmatmul.f32.gmra.mxu0 %v503
        %v543 = vpop.f32.mrf.mxu0
        %v544 = vadd.f32 %v475, %v543
        %545 = vmatmul.f32.gmra.mxu0 %v506
        %v546 = vpop.f32.mrf.mxu0
        %v547 = vadd.f32 %v480, %v546
        %548 = vmatmul.f32.gmra.mxu0 %v509
        %v549 = vpop.f32.mrf.mxu0
        %v550 = vadd.f32 %v485, %v549
        %551 = vdwg.mxu0
        %v552 = vsub.f32 0.0, %v529
        %v553 = vsub.f32 0.0, %v532
        %v554 = vsub.f32 0.0, %v535
        %v555 = vsub.f32 0.0, %v538
        %v556 = vmul.f32 %v552, 1.442695
        %v557 = vpow.pop %v556
        %v558 = vmul.f32 %v553, 1.442695
        %v559 = vpow.pop %v558
        %v560 = vmul.f32 %v554, 1.442695
        %v561 = vpow.pop %v560
        %v562 = vmul.f32 %v555, 1.442695
        %v563 = vpow.pop %v562
        %v564 = vadd.f32 %v557, 1.0
        %v565 = vadd.f32 %v559, 1.0
        %v566 = vadd.f32 %v561, 1.0
        %v567 = vadd.f32 %v563, 1.0
        %v568 = vrcp.pop %v564
        %v569 = vmul.f32 %v564, %v568
        %v570 = vsub.f32 1.0, %v569
        %v571 = vmul.f32 %v568, %v570
        %v572 = vadd.f32 %v568, %v571
        %vm573 = vweird.f32 %v564
        %vm574 = vweird.f32 %v568
        %vm575 = vmor %vm573, %vm574
        %v576 = vsel %vm575, %v568, %v572
        %v577 = vand.u32 2147483647, %v564
        %vm578 = vcmp.eq.f32.partialorder %v577, 8.507059e+37
        %v579 = vand.u32 %v564, 2147483648
        %v580 = vor.u32 1.1754944e-38, %v579
        %v581 = vsel %vm578, %v580, %v576
        %v582 = vmul.f32 1.0, %v581
        %v583 = vrcp.pop %v565
        %v584 = vmul.f32 %v565, %v583
        %v585 = vsub.f32 1.0, %v584
        %v586 = vmul.f32 %v583, %v585
        %v587 = vadd.f32 %v583, %v586
        %vm588 = vweird.f32 %v565
        %vm589 = vweird.f32 %v583
        %vm590 = vmor %vm588, %vm589
        %v591 = vsel %vm590, %v583, %v587
        %v592 = vand.u32 2147483647, %v565
        %vm593 = vcmp.eq.f32.partialorder %v592, 8.507059e+37
        %v594 = vand.u32 %v565, 2147483648
        %v595 = vor.u32 1.1754944e-38, %v594
        %v596 = vsel %vm593, %v595, %v591
        %v597 = vmul.f32 1.0, %v596
        %v598 = vrcp.pop %v566
        %v599 = vmul.f32 %v566, %v598
        %v600 = vsub.f32 1.0, %v599
        %v601 = vmul.f32 %v598, %v600
        %v602 = vadd.f32 %v598, %v601
        %vm603 = vweird.f32 %v566
        %vm604 = vweird.f32 %v598
        %vm605 = vmor %vm603, %vm604
        %v606 = vsel %vm605, %v598, %v602
        %v607 = vand.u32 2147483647, %v566
        %vm608 = vcmp.eq.f32.partialorder %v607, 8.507059e+37
        %v609 = vand.u32 %v566, 2147483648
        %v610 = vor.u32 1.1754944e-38, %v609
        %v611 = vsel %vm608, %v610, %v606
        %v612 = vmul.f32 1.0, %v611
        %v613 = vrcp.pop %v567
        %v614 = vmul.f32 %v567, %v613
        %v615 = vsub.f32 1.0, %v614
        %v616 = vmul.f32 %v613, %v615
        %v617 = vadd.f32 %v613, %v616
        %vm618 = vweird.f32 %v567
        %vm619 = vweird.f32 %v613
        %vm620 = vmor %vm618, %vm619
        %v621 = vsel %vm620, %v613, %v617
        %v622 = vand.u32 2147483647, %v567
        %vm623 = vcmp.eq.f32.partialorder %v622, 8.507059e+37
        %v624 = vand.u32 %v567, 2147483648
        %v625 = vor.u32 1.1754944e-38, %v624
        %v626 = vsel %vm623, %v625, %v621
        %v627 = vmul.f32 1.0, %v626
        %v628 = vmax.f32 %v429, 0.0
        %v629 = vand.u32 2147483647, %v429
        %v630 = vsub.f32 0.0, %v629
        %v631 = vmul.f32 %v630, 1.442695
        %v632 = vpow.pop %v631
        %v633 = vadd.f32 %v632, 1.0
        %v634 = vlog2.pop %v633
        %v635 = vmul.f32 %v634, 0.6931472
        %v636 = vadd.f32 %v628, %v635
        %v637 = vsub.f32 0.0, %v429
        %v638 = vmul.f32 %v637, 1.442695
        %v639 = vpow.pop %v638
        %v640 = vadd.f32 %v639, 1.0
        %v641 = vrcp.pop %v640
        %v642 = vmul.f32 %v640, %v641
        %v643 = vsub.f32 1.0, %v642
        %v644 = vmul.f32 %v641, %v643
        %v645 = vadd.f32 %v641, %v644
        %vm646 = vweird.f32 %v640
        %vm647 = vweird.f32 %v641
        %vm648 = vmor %vm646, %vm647
        %v649 = vsel %vm648, %v641, %v645
        %v650 = vand.u32 2147483647, %v640
        %vm651 = vcmp.eq.f32.partialorder %v650, 8.507059e+37
        %v652 = vand.u32 %v640, 2147483648
        %v653 = vor.u32 1.1754944e-38, %v652
        %v654 = vsel %vm651, %v653, %v649
        %v655 = vmul.f32 1.0, %v654
        %vm656 = vcmask 296208
        %v657 = vsel %vm656, %v429, -inf
        %658 = vmax.xlane.f32.xlu0 %v657
        %v659 = vpop.xlane.xlu0 %658
        %v660 = vsub.f32 %v429, %v659
        %v661 = vmul.f32 %v660, 1.442695
        %v662 = vpow.pop %v661
        %664 = vrot.lane.b32.xlu0 %v662, 94
        %v665 = vpop.permute.xlu0 %664
        %vm667 = vcmask 17408
        %v668 = vsel %vm667, %v665, 0.0
        %669 = vadd.xlane.f32.xlu0 %v668
        %v670 = vpop.xlane.xlu0 %669
        %v671 = vrcp.pop %v670
        %v672 = vmul.f32 %v670, %v671
        %v673 = vsub.f32 1.0, %v672
        %v674 = vmul.f32 %v671, %v673
        %v675 = vadd.f32 %v671, %v674
        %vm676 = vweird.f32 %v670
        %vm677 = vweird.f32 %v671
        %vm678 = vmor %vm676, %vm677
        %v679 = vsel %vm678, %v671, %v675
        %v680 = vand.u32 2147483647, %v670
        %vm681 = vcmp.eq.f32.partialorder %v680, 8.507059e+37
        %v682 = vand.u32 %v670, 2147483648
        %v683 = vor.u32 1.1754944e-38, %v682
        %v684 = vsel %vm681, %v683, %v679
        %v685 = vmul.f32 %v662, %v684
        %v686 = vmul.f32 %v429, %v429
        %vm687 = vcmask 254976
        %v688 = vsel %vm687, %v686, 0.0
        %689 = vadd.xlane.f32.xlu0 %v688
        %v690 = vpop.xlane.xlu0 %689
        %v691 = vadd.f32 %v636, 1.0
        %v692 = vld [vmem:[%s375] sm:$0xff]
        %v693 = vld [vmem:[%s375 + $0x8] sm:$0xff]
        %v694 = vld [vmem:[%s375 + $0x10] sm:$0xff]
        %v695 = vld [vmem:[%s375 + $0x18] sm:$0xff]
        %v696 = vld [vmem:[#allocation2] sm:$0x1]
        %v698 = vsel %vm407, %v429, 0
        %700 = vmatpush.msra.mxu0 0.0
        %701 = vmatpush.msra.mxu0 0.0
        %702 = vmatpush.msra.mxu0 0.0
        %703 = vmatpush.msra.mxu0 0.0
        %704 = vmatpush.msra.mxu0 0.0
        %705 = vmatpush.msra.mxu0 0.0
        %706 = vmatpush.msra.mxu0 0.0
        %707 = vmatpush.msra.mxu0 0.0
        %708 = vmatpush.msra.mxu0 0.0
        %709 = vmatpush.msra.mxu0 0.0
        %710 = vmatpush.msra.mxu0 0.0
        %711 = vmatpush.msra.mxu0 0.0
        %712 = vmatpush.msra.mxu0 %v695
        %713 = vmatpush.msra.mxu0 %v694
        %714 = vmatpush.msra.mxu0 %v693
        %715 = vmatpush.msra.mxu0 %v692
        %716 = vmatmul.f32.gmra.mxu0 %v698
        %v717 = vpop.f32.mrf.mxu0
        %v718 = vadd.f32 0.0, %v717
        %719 = vdwg.mxu0
        %v720 = vmul.f32 %v692, %v692
        %v721 = vmul.f32 %v693, %v693
        %v722 = vmul.f32 %v694, %v694
        %v723 = vmul.f32 %v695, %v695
        %v724 = vadd.f32 %v720, %v721
        %v725 = vadd.f32 %v724, %v722
        %v726 = vadd.f32 %v725, %v723
        %v727 = vrot.slane %v726, 4
        %v728 = vadd.f32 %v726, %v727
        %v729 = vrot.slane %v728, 2
        %v730 = vadd.f32 %v728, %v729
        %v731 = vrot.slane %v730, 1
        %v732 = vadd.f32 %v730, %v731
        %v733 = vmul.f32 %v732, %v690
        %v734 = vmax.f32 %v733, 1e-16
        %v735 = vrsqrt.pop %v734
        %v736 = vmul.f32 %v735, %v734
        %v737 = vmul.f32 %v736, %v735
        %v738 = vmul.f32 0.5, %v737
        %v739 = vsub.f32 1.5, %v738
        %v740 = vmul.f32 %v735, %v739
        %vm741 = vweird.f32 %v734
        %vm742 = vweird.f32 %v735
        %vm743 = vmor %vm741, %vm742
        %v744 = vsel %vm743, %v735, %v740
        %v745 = vmul.f32 %v718, %v744
        %747 = vset.pattern.permute.xlu0 32
        %748 = vperm.xlu0 %747, %v636
        %v749 = vpop.permute.xlu0 %748
        %v751 = vmul.f32 %v749, %v745
        %vm752 = vcmask 1040384
        %v753 = vsel %vm752, %v751, -inf
        %754 = vmax.xlane.f32.xlu0 %v753
        %v755 = vpop.xlane.xlu0 %754
        %v756 = vsub.f32 %v751, %v755
        %v757 = vmul.f32 %v756, 1.442695
        %v758 = vpow.pop %v757
        %v759 = vsel %vm752, %v758, 0.0
        %760 = vadd.xlane.f32.xlu0 %v759
        %v761 = vpop.xlane.xlu0 %760
        %v762 = vrcp.pop %v761
        %v763 = vmul.f32 %v761, %v762
        %v764 = vsub.f32 1.0, %v763
        %v765 = vmul.f32 %v762, %v764
        %v766 = vadd.f32 %v762, %v765
        %vm767 = vweird.f32 %v761
        %vm768 = vweird.f32 %v762
        %vm769 = vmor %vm767, %vm768
        %v770 = vsel %vm769, %v762, %v766
        %v771 = vand.u32 2147483647, %v761
        %vm772 = vcmp.eq.f32.partialorder %v771, 8.507059e+37
        %v773 = vand.u32 %v761, 2147483648
        %v774 = vor.u32 1.1754944e-38, %v773
        %v775 = vsel %vm772, %v774, %v770
        %v776 = vmul.f32 %v758, %v775
        %778 = vset.pattern.permute.xlu0 33
        %779 = vperm.xlu0 %778, %v655
        %v780 = vpop.permute.xlu0 %779
        %v782 = vmul.f32 %v780, %v776
        %v783 = vsub.f32 1.0, %v655
        %785 = vset.pattern.permute.xlu0 33
        %786 = vperm.xlu0 %785, %v783
        %v787 = vpop.permute.xlu0 %786
        %v789 = vmul.f32 %v787, %v696
        %v790 = vadd.f32 %v782, %v789
        %791 = vrot.lane.b32.xlu0 %v790, 1
        %v792 = vpop.permute.xlu0 %791
        %794 = vset.pattern.permute.xlu0 34
        %795 = vperm.xlu0 %794, %v685
        %v796 = vpop.permute.xlu0 %795
        %v798 = vmul.f32 %v796, %v792
        %799 = vset.pattern.permute.xlu0 35
        %800 = vperm.xlu0 %799, %v685
        %v801 = vpop.permute.xlu0 %800
        %v803 = vmul.f32 %v801, %v790
        %v804 = vadd.f32 %v798, %v803
        %805 = vrot.lane.b32.xlu0 %v790, 127
        %v806 = vpop.permute.xlu0 %805
        %807 = vset.pattern.permute.xlu0 36
        %808 = vperm.xlu0 %807, %v685
        %v809 = vpop.permute.xlu0 %808
        %v811 = vmul.f32 %v809, %v806
        %v812 = vadd.f32 %v804, %v811
        %vm813 = vcmp.gt.f32.partialorder %v812, 0.0
        %v814 = vmax.f32 %v812, 1e-38
        %v815 = vlog2.pop %v814
        %v816 = vmul.f32 %v815, 0.6931472
        %818 = vset.pattern.permute.xlu0 37
        %819 = vperm.xlu0 %818, %v691
        %v820 = vpop.permute.xlu0 %819
        %v822 = vmul.f32 %v820, %v816
        %v823 = vmul.f32 %v822, 1.442695
        %v824 = vpow.pop %v823
        %v825 = vsel %vm813, %v824, 0.0
        %v826 = vsel %vm752, %v825, 0.0
        %827 = vadd.xlane.f32.xlu0 %v826
        %v828 = vpop.xlane.xlu0 %827
        %v829 = vadd.f32 %v828, 1e-16
        %v830 = vrcp.pop %v829
        %v831 = vmul.f32 %v829, %v830
        %v832 = vsub.f32 1.0, %v831
        %v833 = vmul.f32 %v830, %v832
        %v834 = vadd.f32 %v830, %v833
        %vm835 = vweird.f32 %v829
        %vm836 = vweird.f32 %v830
        %vm837 = vmor %vm835, %vm836
        %v838 = vsel %vm837, %v830, %v834
        %v839 = vand.u32 2147483647, %v829
        %vm840 = vcmp.eq.f32.partialorder %v839, 8.507059e+37
        %v841 = vand.u32 %v829, 2147483648
        %v842 = vor.u32 1.1754944e-38, %v841
        %v843 = vsel %vm840, %v842, %v838
        %v844 = vmul.f32 %v825, %v843
        %845 = vst [vmem:[%s347] sm:$0x1] %v844
        %846 = vst [vmem:[#allocation2] sm:$0x1] %v844
        %848 = vset.pattern.permute.xlu0 0
        %849 = vperm.xlu0 %848, %v582
        %v850 = vpop.permute.xlu0 %849
        %853 = vset.pattern.permute.xlu0 0
        %854 = vperm.xlu0 %853, %v597
        %v855 = vpop.permute.xlu0 %854
        %858 = vset.pattern.permute.xlu0 0
        %859 = vperm.xlu0 %858, %v612
        %v860 = vpop.permute.xlu0 %859
        %863 = vset.pattern.permute.xlu0 0
        %864 = vperm.xlu0 %863, %v627
        %v865 = vpop.permute.xlu0 %864
        %v867 = vperm.slane %v844, 0
        %v868 = vmul.f32 %v850, %v867
        %v869 = vmul.f32 %v855, %v867
        %v870 = vmul.f32 %v860, %v867
        %v871 = vmul.f32 %v865, %v867
        %v872 = vsub.f32 1.0, %v868
        %v873 = vsub.f32 1.0, %v869
        %v874 = vsub.f32 1.0, %v870
        %v875 = vsub.f32 1.0, %v871
        %v876 = vmul.f32 %v692, %v872
        %v877 = vmul.f32 %v693, %v873
        %v878 = vmul.f32 %v694, %v874
        %v879 = vmul.f32 %v695, %v875
        %881 = vset.pattern.permute.xlu0 0
        %882 = vperm.xlu0 %881, %v541
        %v883 = vpop.permute.xlu0 %882
        %886 = vset.pattern.permute.xlu0 0
        %887 = vperm.xlu0 %886, %v544
        %v888 = vpop.permute.xlu0 %887
        %891 = vset.pattern.permute.xlu0 0
        %892 = vperm.xlu0 %891, %v547
        %v893 = vpop.permute.xlu0 %892
        %896 = vset.pattern.permute.xlu0 0
        %897 = vperm.xlu0 %896, %v550
        %v898 = vpop.permute.xlu0 %897
        %v900 = vmul.f32 %v883, %v867
        %v901 = vmul.f32 %v888, %v867
        %v902 = vmul.f32 %v893, %v867
        %v903 = vmul.f32 %v898, %v867
        %v904 = vadd.f32 %v876, %v900
        %v905 = vadd.f32 %v877, %v901
        %v906 = vadd.f32 %v878, %v902
        %v907 = vadd.f32 %v879, %v903
        %908 = vst [vmem:[%s375] sm:$0xff] %v904
        %909 = vst [vmem:[%s375 + $0x8] sm:$0xff] %v905
        %910 = vst [vmem:[%s375 + $0x10] sm:$0xff] %v906
        %911 = vst [vmem:[%s375 + $0x18] sm:$0xff] %v907
        %s912 = scalar_lea.vmem %s375, 32
        %v913 = vld [vmem:[%s912] sm:$0xff]
        %v914 = vld [vmem:[%s912 + $0x8] sm:$0xff]
        %v915 = vld [vmem:[%s912 + $0x10] sm:$0xff]
        %v916 = vld [vmem:[%s912 + $0x18] sm:$0xff]
        %v917 = vld [vmem:[#allocation2 + $0x1] sm:$0x1]
        %v918 = vrot.slane %v429, 1
        %v919 = vsel %vm407, %v918, 0
        %921 = vmatpush.msra.mxu0 0.0
        %922 = vmatpush.msra.mxu0 0.0
        %923 = vmatpush.msra.mxu0 0.0
        %924 = vmatpush.msra.mxu0 0.0
        %925 = vmatpush.msra.mxu0 0.0
        %926 = vmatpush.msra.mxu0 0.0
        %927 = vmatpush.msra.mxu0 0.0
        %928 = vmatpush.msra.mxu0 0.0
        %929 = vmatpush.msra.mxu0 0.0
        %930 = vmatpush.msra.mxu0 0.0
        %931 = vmatpush.msra.mxu0 0.0
        %932 = vmatpush.msra.mxu0 0.0
        %933 = vmatpush.msra.mxu0 %v916
        %934 = vmatpush.msra.mxu0 %v915
        %935 = vmatpush.msra.mxu0 %v914
        %936 = vmatpush.msra.mxu0 %v913
        %937 = vmatmul.f32.gmra.mxu0 %v919
        %v938 = vpop.f32.mrf.mxu0
        %v939 = vadd.f32 0.0, %v938
        %940 = vdwg.mxu0
        %v941 = vmul.f32 %v913, %v913
        %v942 = vmul.f32 %v914, %v914
        %v943 = vmul.f32 %v915, %v915
        %v944 = vmul.f32 %v916, %v916
        %v945 = vadd.f32 %v941, %v942
        %v946 = vadd.f32 %v945, %v943
        %v947 = vadd.f32 %v946, %v944
        %v948 = vrot.slane %v947, 4
        %v949 = vadd.f32 %v947, %v948
        %v950 = vrot.slane %v949, 2
        %v951 = vadd.f32 %v949, %v950
        %v952 = vrot.slane %v951, 1
        %v953 = vadd.f32 %v951, %v952
        %v954 = vmul.f32 %v953, %v690
        %v955 = vmax.f32 %v954, 1e-16
        %v956 = vrsqrt.pop %v955
        %v957 = vmul.f32 %v956, %v955
        %v958 = vmul.f32 %v957, %v956
        %v959 = vmul.f32 0.5, %v958
        %v960 = vsub.f32 1.5, %v959
        %v961 = vmul.f32 %v956, %v960
        %vm962 = vweird.f32 %v955
        %vm963 = vweird.f32 %v956
        %vm964 = vmor %vm962, %vm963
        %v965 = vsel %vm964, %v956, %v961
        %v967 = vrot.slane %v965, 1
        %v969 = vmul.f32 %v939, %v967
        %v971 = vrot.slane %v969, 7
        %v973 = vmul.f32 %v749, %v971
        %vm974 = vcmask 1041409
        %v975 = vsel %vm974, %v973, -inf
        %976 = vmax.xlane.f32.xlu0 %v975
        %v977 = vpop.xlane.xlu0 %976
        %v978 = vsub.f32 %v973, %v977
        %v979 = vmul.f32 %v978, 1.442695
        %v980 = vpow.pop %v979
        %v981 = vsel %vm974, %v980, 0.0
        %982 = vadd.xlane.f32.xlu0 %v981
        %v983 = vpop.xlane.xlu0 %982
        %v984 = vrcp.pop %v983
        %v985 = vmul.f32 %v983, %v984
        %v986 = vsub.f32 1.0, %v985
        %v987 = vmul.f32 %v984, %v986
        %v988 = vadd.f32 %v984, %v987
        %vm989 = vweird.f32 %v983
        %vm990 = vweird.f32 %v984
        %vm991 = vmor %vm989, %vm990
        %v992 = vsel %vm991, %v984, %v988
        %v993 = vand.u32 2147483647, %v983
        %vm994 = vcmp.eq.f32.partialorder %v993, 8.507059e+37
        %v995 = vand.u32 %v983, 2147483648
        %v996 = vor.u32 1.1754944e-38, %v995
        %v997 = vsel %vm994, %v996, %v992
        %v998 = vmul.f32 %v980, %v997
        %v999 = vmul.f32 %v780, %v998
        %v1001 = vrot.slane %v917, 7
        %v1003 = vmul.f32 %v787, %v1001
        %v1004 = vadd.f32 %v999, %v1003
        %v1006 = vrot.slane %v1004, 1
        %1008 = vrot.lane.b32.xlu0 %v1006, 1
        %v1009 = vpop.permute.xlu0 %1008
        %v1011 = vrot.slane %v1009, 7
        %v1013 = vmul.f32 %v796, %v1011
        %v1014 = vmul.f32 %v801, %v1004
        %v1015 = vadd.f32 %v1013, %v1014
        %1016 = vrot.lane.b32.xlu0 %v1006, 127
        %v1017 = vpop.permute.xlu0 %1016
        %v1019 = vrot.slane %v1017, 7
        %v1021 = vmul.f32 %v809, %v1019
        %v1022 = vadd.f32 %v1015, %v1021
        %vm1023 = vcmp.gt.f32.partialorder %v1022, 0.0
        %v1024 = vmax.f32 %v1022, 1e-38
        %v1025 = vlog2.pop %v1024
        %v1026 = vmul.f32 %v1025, 0.6931472
        %v1027 = vmul.f32 %v820, %v1026
        %v1028 = vmul.f32 %v1027, 1.442695
        %v1029 = vpow.pop %v1028
        %v1030 = vsel %vm1023, %v1029, 0.0
        %v1031 = vsel %vm974, %v1030, 0.0
        %1032 = vadd.xlane.f32.xlu0 %v1031
        %v1033 = vpop.xlane.xlu0 %1032
        %v1034 = vadd.f32 %v1033, 1e-16
        %v1035 = vrcp.pop %v1034
        %v1036 = vmul.f32 %v1034, %v1035
        %v1037 = vsub.f32 1.0, %v1036
        %v1038 = vmul.f32 %v1035, %v1037
        %v1039 = vadd.f32 %v1035, %v1038
        %vm1040 = vweird.f32 %v1034
        %vm1041 = vweird.f32 %v1035
        %vm1042 = vmor %vm1040, %vm1041
        %v1043 = vsel %vm1042, %v1035, %v1039
        %v1044 = vand.u32 2147483647, %v1034
        %vm1045 = vcmp.eq.f32.partialorder %v1044, 8.507059e+37
        %v1046 = vand.u32 %v1034, 2147483648
        %v1047 = vor.u32 1.1754944e-38, %v1046
        %v1048 = vsel %vm1045, %v1047, %v1043
        %v1049 = vmul.f32 %v1030, %v1048
        %1050 = vst [vmem:[%s347] sm:$0x2] %v1049
        %1051 = vst [vmem:[#allocation2] sm:$0x2] %v1049
        %1052 = vset.pattern.permute.xlu0 1
        %1053 = vperm.xlu0 %1052, %v582
        %v1054 = vpop.permute.xlu0 %1053
        %1056 = vset.pattern.permute.xlu0 1
        %1057 = vperm.xlu0 %1056, %v597
        %v1058 = vpop.permute.xlu0 %1057
        %1060 = vset.pattern.permute.xlu0 1
        %1061 = vperm.xlu0 %1060, %v612
        %v1062 = vpop.permute.xlu0 %1061
        %1064 = vset.pattern.permute.xlu0 1
        %1065 = vperm.xlu0 %1064, %v627
        %v1066 = vpop.permute.xlu0 %1065
        %v1068 = vperm.slane %v1049, 1
        %v1069 = vmul.f32 %v1054, %v1068
        %v1070 = vmul.f32 %v1058, %v1068
        %v1071 = vmul.f32 %v1062, %v1068
        %v1072 = vmul.f32 %v1066, %v1068
        %v1073 = vsub.f32 1.0, %v1069
        %v1074 = vsub.f32 1.0, %v1070
        %v1075 = vsub.f32 1.0, %v1071
        %v1076 = vsub.f32 1.0, %v1072
        %v1077 = vmul.f32 %v913, %v1073
        %v1078 = vmul.f32 %v914, %v1074
        %v1079 = vmul.f32 %v915, %v1075
        %v1080 = vmul.f32 %v916, %v1076
        %1081 = vset.pattern.permute.xlu0 1
        %1082 = vperm.xlu0 %1081, %v541
        %v1083 = vpop.permute.xlu0 %1082
        %1085 = vset.pattern.permute.xlu0 1
        %1086 = vperm.xlu0 %1085, %v544
        %v1087 = vpop.permute.xlu0 %1086
        %1089 = vset.pattern.permute.xlu0 1
        %1090 = vperm.xlu0 %1089, %v547
        %v1091 = vpop.permute.xlu0 %1090
        %1093 = vset.pattern.permute.xlu0 1
        %1094 = vperm.xlu0 %1093, %v550
        %v1095 = vpop.permute.xlu0 %1094
        %v1097 = vmul.f32 %v1083, %v1068
        %v1098 = vmul.f32 %v1087, %v1068
        %v1099 = vmul.f32 %v1091, %v1068
        %v1100 = vmul.f32 %v1095, %v1068
        %v1101 = vadd.f32 %v1077, %v1097
        %v1102 = vadd.f32 %v1078, %v1098
        %v1103 = vadd.f32 %v1079, %v1099
        %v1104 = vadd.f32 %v1080, %v1100
        %1105 = vst [vmem:[%s912] sm:$0xff] %v1101
        %1106 = vst [vmem:[%s912 + $0x8] sm:$0xff] %v1102
        %1107 = vst [vmem:[%s912 + $0x10] sm:$0xff] %v1103
        %1108 = vst [vmem:[%s912 + $0x18] sm:$0xff] %v1104
        %s1109 = sand.u32 %s209, 1
        %s1110 = scalar_lea.sflag [#allocation4], %s1109
        %s1111 = sand.u32 %s209, 1
        %s1112 = smul.addr %s1111, 2
        %s1113 = scalar_lea.vmem [#allocation3], %s1112
        %p1114 = scmp.lt.s32.totalorder %s27, 0
        %s1115 = scalar_select %p1114, %s27, 0
        %s1116 = smul.addr %s1115, 8
        %s1117 = smul.addr %s1116, 8
        %s1118 = scalar_lea.vmem %s8, %s1117
        // Predicated region
        $region53: #{ntm_write_head_seq.1} parent=47 // pred_check
          %p1119 = pneg %p219
        $region54: #{ntm_write_head_seq.1} parent=47 // pred_check_branch
          %1121 = sbr.rel (%p1119) target = $region56
        $region55: #{ntm_write_head_seq.1} parent=47 // pred_region
          %1123 = vsyncadd %s1110, 0
          %s1124 = sadd.s32 %s27, %s28
          %s1125 = smul.addr %s1124, 2
          %s1126 = scalar_lea.hbm %s7, %s1125
          %s1128 = sshll.u32 %s1113, 4
          %s1129 = int_to_ptr.vmem [resolvable:$true] %s1128
          %s1130 = sshll.u32 %s1126, 4
          %s1131 = int_to_ptr.hbm [resolvable:$true] %s1130
          %1133 = dma.vmem_to_hbm [thread:$0]  %s1129, 32, %s1131, %s1110
        $region56: #{ntm_write_head_seq.1} parent=47 // pred_fallthru
          _
        // Predicated region
        $region57: #{ntm_write_head_seq.1} parent=47 // pred_check
          %p1134 = pneg %p245
        $region58: #{ntm_write_head_seq.1} parent=47 // pred_check_branch
          %1136 = sbr.rel (%p1134) target = $region60
        $region59: #{ntm_write_head_seq.1} parent=47 // pred_region
          _
        $region60: #{ntm_write_head_seq.1} parent=47 // pred_fallthru
          _
        // Predicated region
        $region61: #{ntm_write_head_seq.1} parent=47 // pred_check
          %p1137 = pneg %p245
        $region62: #{ntm_write_head_seq.1} parent=47 // pred_check_branch
          %1139 = sbr.rel (%p1137) target = $region64
        $region63: #{ntm_write_head_seq.1} parent=47 // pred_region
          %p1140 = scmp.lt.s32.totalorder %s27, 0
          %s1141 = scalar_select %p1140, %s27, 0
          %s1142 = smul.addr %s1141, 8
          %s1143 = smul.addr %s1142, 8
          %s1144 = scalar_lea.vmem %s8, %s1143
        $region64: #{ntm_write_head_seq.1} parent=47 // pred_fallthru
          _
      $region48: #{ntm_write_head_seq.1} parent=5 // pred_fallthru
        _
      %p1145 = scmp.le.s32.totalorder 2, %s18
      // Predicated region
      $region65: #{ntm_write_head_seq.1} parent=5 // pred_check
        %p1146 = pneg %p1145
      $region66: #{ntm_write_head_seq.1} parent=5 // pred_check_branch
        %1148 = sbr.rel (%p1146) target = $region68
      $region67: #{ntm_write_head_seq.1} parent=5 // pred_region
        %s1149 = ssub.s32 %s18, 2
        // Predicated region
        $region69: #{ntm_write_head_seq.1} parent=67 // pred_check
          %p1150 = pneg %p225
        $region70: #{ntm_write_head_seq.1} parent=67 // pred_check_branch
          %1152 = sbr.rel (%p1150) target = $region72
        $region71: #{ntm_write_head_seq.1} parent=67 // pred_region
          %s1153 = sand.u32 %s210, 1
          %s1154 = scalar_lea.sflag [#allocation4], %s1153
          %s1155 = sand.u32 %s210, 1
          %s1156 = smul.addr %s1155, 2
          %s1157 = scalar_lea.vmem [#allocation3], %s1156
          %1159 = dma.done %s1154, 32
        $region72: #{ntm_write_head_seq.1} parent=67 // pred_fallthru
          _
      $region68: #{ntm_write_head_seq.1} parent=5 // pred_fallthru
        _
    $region6: #{ntm_write_head_seq.1} parent=1 // loop_footer
      %s22 = sadd.s32 1, %s18
    $region7: #{ntm_write_head_seq.1} parent=1 // loop_footer_branch
      %17 = sbr.rel target = $region3
    $region8: #{ntm_write_head_seq.1} parent=1 // loop_exit
      _
    %1160 = vsyncpa [#allocation4], 1
    %s1161 = scalar_lea.sflag [#allocation4], 1
    %1162 = vsyncpa %s1161, 1

</llo_original>
